<compile_context>
chip_gen: v7x
topology: tpu7x:2x2x1
jax: 0.10.0
libtpu: 0.0.40
codegen_flags: <defaults>
</compile_context>

<pallas_src>
import jax
import jax.numpy as jnp
import numpy as np
from jax.experimental import pallas as pl
from jax.experimental.pallas import tpu as pltpu

T = 4          # Encoder.t : number of GINEConv rounds
BF16 = jnp.bfloat16
F32 = jnp.float32


def _round_up(a, m):
    return ((a + m - 1) // m) * m


def _vmem_capacity_bytes():
    try:
        return int(pltpu.get_tpu_info().vmem_capacity_bytes)
    except Exception:
        return 64 * 1024 * 1024        # conservative fallback (v7x physical)


def _nbytes(*arrs):
    return int(sum(int(a.size) * a.dtype.itemsize for a in arrs))


# --------------------------------------------------------------------------
# Kernel A: node embedding — node_trans + T GINEConv rounds.
# grid = (T, num_edge_tiles), both "arbitrary" (sequential rounds, edge
# reduction).  h (f32 + bf16 copy) and the per-round aggregation live in VMEM
# scratch; each round's output is one [N, H] slab of the [T, N, H] all_x out.
# --------------------------------------------------------------------------
def gine_rounds_kernel(x_ref, ea_ref, src_ref, dst_ref,
                       wn_ref, bn_ref, we_ref, be_ref,
                       w1_ref, b1_ref, w2_ref, b2_ref,
                       allx_ref, h_ref, hb_ref, aggr_ref):
    r = pl.program_id(0)            # round index (sequential)
    et = pl.program_id(1)           # edge-tile index (reduction)
    n_et = pl.num_programs(1)
    n_pad = h_ref.shape[0]
    e_tile = src_ref.shape[0]

    @pl.when(jnp.logical_and(r == 0, et == 0))
    def _init_h():
        # node_trans: h = x @ Wn + bn   (bf16 operands, f32 accumulation)
        h0 = (jnp.dot(x_ref[...], wn_ref[...],
                      preferred_element_type=F32) + bn_ref[...])
        h_ref[...] = h0
        hb_ref[...] = h0.astype(BF16)

    @pl.when(et == 0)
    def _zero_aggr():
        aggr_ref[...] = jnp.zeros_like(aggr_ref)

    # edge_trans for this edge tile (K tiny; recompute per step is cheap).
    eh = (jnp.dot(ea_ref[...], we_ref[...], preferred_element_type=F32)
          + be_ref[...])                                               # [ET, H]

    # gather x_j = h[src]: one-hot built in-kernel from int32 indices.
    src_onehot = (src_ref[...] ==
                  jax.lax.broadcasted_iota(jnp.int32, (e_tile, n_pad), 1)
                  ).astype(BF16)                                       # [ET, N]
    xj = jnp.dot(src_onehot, hb_ref[...], preferred_element_type=F32)  # [ET, H]
    msg = jnp.maximum(xj + eh, 0.0)                                    # relu(x_j + e)

    # scatter-add messages to destination nodes (padded edges have dst = -1).
    dst_onehot_t = (jax.lax.broadcasted_iota(jnp.int32, (n_pad, e_tile), 0) ==
                    dst_ref[...]).astype(BF16)                         # [N, ET]
    aggr_ref[...] += jnp.dot(dst_onehot_t, msg.astype(BF16),
                             preferred_element_type=F32)               # [N, H]

    @pl.when(et == n_et - 1)
    def _finish_round():
        # GINEConv: h' = MLP((1+eps)*h + aggr); eps = 0 so the multiply folds out.
        # MLP assumed Linear -> ReLU -> Linear (standard GIN MLP).
        z = h_ref[...] + aggr_ref[...]
        z = jnp.maximum(jnp.dot(z.astype(BF16), w1_ref[...],
                                preferred_element_type=F32) + b1_ref[...], 0.0)
        hn = jnp.dot(z.astype(BF16), w2_ref[...],
                     preferred_element_type=F32) + b2_ref[...]
        h_ref[...] = hn
        hb_ref[...] = hn.astype(BF16)
        allx_ref[...] = hn.astype(BF16)      # round r's slab of all_x


# --------------------------------------------------------------------------
# Kernel B: graph pooling + final linear.
# grid = (graph_tiles "parallel", node_tiles "arbitrary"); pooled sums are
# accumulated in a VMEM scratch, final linear applied on the last node tile.
#   res[g] = sum_t (pool[g] @ all_x[t]) @ Wl[t] + bl
# --------------------------------------------------------------------------
def pool_linear_kernel(gid_ref, allx_ref, wl_ref, bl_ref, out_ref, pooled_ref):
    g = pl.program_id(0)
    nt = pl.program_id(1)
    n_nt = pl.num_programs(1)
    g_tile = out_ref.shape[0]
    n_tile = gid_ref.shape[1]
    t_rounds = allx_ref.shape[0]

    @pl.when(nt == 0)
    def _init():
        pooled_ref[...] = jnp.zeros_like(pooled_ref)

    # pooling one-hot built in-kernel from graph ids (padded nodes have id -1).
    gids = (jax.lax.broadcasted_iota(jnp.int32, (g_tile, n_tile), 0)
            + g * g_tile)
    pool = (gids == gid_ref[...]).astype(BF16)                         # [GT, NT]
    for t in range(t_rounds):                                          # static unroll
        pooled_ref[t] += jnp.dot(pool, allx_ref[t],
                                 preferred_element_type=F32)           # [GT, H]

    @pl.when(nt == n_nt - 1)
    def _finish():
        acc = jnp.broadcast_to(bl_ref[...], out_ref.shape).astype(F32)
        for t in range(t_rounds):
            acc = acc + jnp.dot(pooled_ref[t].astype(BF16), wl_ref[t],
                                preferred_element_type=F32)            # [GT, O]
        out_ref[...] = acc


def encoder_forward(x, edge_index, edge_attr, graph_ids, num_graphs, params,
                    *, graph_tile=16):
    """Equivalent of Encoder.forward(batch) -> res of shape [num_graphs, dim_out]."""
    N, dim_in = x.shape
    E = edge_index.shape[1]
    K = edge_attr.shape[1]
    H = params["wn"].shape[1]
    dim_out = params["wl"].shape[1]

    # Lane-dense padding (review item): hidden / output dims to multiples of 128.
    H_pad = _round_up(H, 128)
    O_pad = _round_up(dim_out, 128)
    N_pad = _round_up(N, 128)
    G_pad = _round_up(num_graphs, graph_tile)

    # Per-generation VMEM budget (v5e/v6e: 128 MiB, v7x: 64 MiB physical).
    vmem_budget = int(_vmem_capacity_bytes() * 0.70)

    # edge_tile derived from the VMEM budget: per step the dominant footprint is
    # the two in-kernel [edge_tile, N_pad] bf16 one-hot operands plus the resident
    # h/hb/aggr scratch and the double-buffered [N_pad, H_pad] all_x out block.
    fixed = N_pad * H_pad * (4 + 2 + 4)            # h f32, h bf16, aggr f32
    fixed += 2 * N_pad * H_pad * 2                 # double-buffered all_x block
    fixed += 4 * H_pad * (2 * H_pad + dim_in + K + 8)   # weights/biases (generous)
    avail = max(vmem_budget - fixed, 6 * 128 * N_pad)
    edge_tile = int(min(2048, max(128, (avail // (6 * N_pad)) // 128 * 128)))
    edge_tile = min(edge_tile, _round_up(E, 128))
    E_pad = _round_up(E, edge_tile)
    n_et = E_pad // edge_tile

    # ---- pad / cast inputs (padded edges: src/dst = -1 -> no-op; padded nodes: id -1)
    src = edge_index[0].astype(jnp.int32)
    dst = edge_index[1].astype(jnp.int32)
    src_p = jnp.full((E_pad, 1), -1, jnp.int32).at[:E, 0].set(src)
    dst_p = jnp.full((1, E_pad), -1, jnp.int32).at[0, :E].set(dst)
    ea_p = jnp.zeros((E_pad, K), BF16).at[:E].set(edge_attr.astype(BF16))
    gid_p = jnp.full((1, N_pad), -1, jnp.int32).at[0, :N].set(graph_ids.astype(jnp.int32))
    x_p = jnp.zeros((N_pad, dim_in), BF16).at[:N].set(x.astype(BF16))

    # ---- pad / cast weights (zero-padded columns keep padded lanes exactly 0)
    def padw(w, rows, cols):
        return jnp.zeros((rows, cols), BF16).at[:w.shape[0], :w.shape[1]].set(w.astype(BF16))

    def padb(b, cols):
        return jnp.zeros((1, cols), F32).at[:, :b.shape[1]].set(b.astype(F32))

    wn, bn = padw(params["wn"], dim_in, H_pad), padb(params["bn"], H_pad)
    we, be = padw(params["we"], K, H_pad), padb(params["be"], H_pad)
    w1, b1 = padw(params["w1"], H_pad, H_pad), padb(params["b1"], H_pad)
    w2, b2 = padw(params["w2"], H_pad, H_pad), padb(params["b2"], H_pad)
    wl3 = params["wl"].reshape(T, H, dim_out)       # final linear split per round
    wl = jnp.zeros((T, H_pad, O_pad), BF16).at[:, :H, :dim_out].set(wl3.astype(BF16))
    bl = jnp.zeros((1, O_pad), F32).at[:, :dim_out].set(params["bl"].astype(F32))

    def const2(shape):
        return pl.BlockSpec(shape, lambda r, et: (0, 0))

    # ---- kernel A: node embedding ----
    flops_a = int(2 * N_pad * dim_in * H_pad
                  + T * (2 * E_pad * K * H_pad + 4 * E_pad * N_pad * H_pad
                         + 4 * N_pad * H_pad * H_pad))
    bytes_a = _nbytes(x_p, ea_p, src_p, dst_p, wn, bn, we, be, w1, b1, w2, b2) \
        + T * N_pad * H_pad * 2

    all_x = pl.pallas_call(
        gine_rounds_kernel,
        out_shape=jax.ShapeDtypeStruct((T, N_pad, H_pad), BF16),
        grid=(T, n_et),
        in_specs=[
            const2((N_pad, dim_in)),                              # x
            pl.BlockSpec((edge_tile, K), lambda r, et: (et, 0)),  # edge_attr tile
            pl.BlockSpec((edge_tile, 1), lambda r, et: (et, 0)),  # src index tile
            pl.BlockSpec((1, edge_tile), lambda r, et: (0, et)),  # dst index tile
            const2((dim_in, H_pad)), const2((1, H_pad)),          # wn, bn
            const2((K, H_pad)), const2((1, H_pad)),               # we, be
            const2((H_pad, H_pad)), const2((1, H_pad)),           # w1, b1
            const2((H_pad, H_pad)), const2((1, H_pad)),           # w2, b2
        ],
        out_specs=pl.BlockSpec((None, N_pad, H_pad), lambda r, et: (r, 0, 0)),
        scratch_shapes=[pltpu.VMEM((N_pad, H_pad), F32),     # h (f32)
                        pltpu.VMEM((N_pad, H_pad), BF16),    # h (bf16, per-round cast)
                        pltpu.VMEM((N_pad, H_pad), F32)],    # per-round aggregation
        compiler_params=pltpu.CompilerParams(
            dimension_semantics=("arbitrary", "arbitrary"),
            vmem_limit_bytes=vmem_budget),
        cost_estimate=pl.CostEstimate(flops=flops_a, transcendentals=0,
                                      bytes_accessed=bytes_a),
    )(x_p, ea_p, src_p, dst_p, wn, bn, we, be, w1, b1, w2, b2)

    # ---- kernel B: pooling + final linear (graph-parallel, node-tiled) ----
    node_tile = min(N_pad, 1024)
    while N_pad % node_tile:
        node_tile -= 128          # terminates at 128, which always divides N_pad
    n_nt = N_pad // node_tile

    flops_b = int(T * (2 * G_pad * N_pad * H_pad + 2 * G_pad * H_pad * O_pad))
    bytes_b = _nbytes(gid_p, all_x, wl, bl) + G_pad * O_pad * 4

    res = pl.pallas_call(
        pool_linear_kernel,
        out_shape=jax.ShapeDtypeStruct((G_pad, O_pad), F32),
        grid=(G_pad // graph_tile, n_nt),
        in_specs=[
            pl.BlockSpec((1, node_tile), lambda g, nt: (0, nt)),           # graph ids
            pl.BlockSpec((T, node_tile, H_pad), lambda g, nt: (0, nt, 0)), # all_x tile
            pl.BlockSpec((T, H_pad, O_pad), lambda g, nt: (0, 0, 0)),      # Wl
            pl.BlockSpec((1, O_pad), lambda g, nt: (0, 0)),                # bl
        ],
        out_specs=pl.BlockSpec((graph_tile, O_pad), lambda g, nt: (g, 0)),
        scratch_shapes=[pltpu.VMEM((T, graph_tile, H_pad), F32)],          # pooled acc
        compiler_params=pltpu.CompilerParams(
            dimension_semantics=("parallel", "arbitrary"),
            vmem_limit_bytes=vmem_budget),
        cost_estimate=pl.CostEstimate(flops=flops_b, transcendentals=0,
                                      bytes_accessed=bytes_b),
    )(gid_p, all_x, wl, bl)

    return res[:num_graphs, :dim_out]


# --------------------------------------------------------------------------
# Pure-JAX f32 reference of Encoder.forward (for correctness check).
# --------------------------------------------------------------------------
def encoder_reference(x, edge_index, edge_attr, graph_ids, num_graphs, params):
    h = x.astype(F32) @ params["wn"] + params["bn"]
    eh = edge_attr.astype(F32) @ params["we"] + params["be"]
    src, dst = edge_index[0], edge_index[1]
    hs = []
    for _ in range(T):
        msg = jax.nn.relu(h[src] + eh)
        aggr = jnp.zeros_like(h).at[dst].add(msg)
        z = h + aggr
        z = jax.nn.relu(z @ params["w1"] + params["b1"])
        h = z @ params["w2"] + params["b2"]
        hs.append(h)
    all_x = jnp.concatenate(hs, axis=-1)
    pooled = jnp.zeros((num_graphs, all_x.shape[-1]), F32).at[graph_ids].add(all_x)
    return pooled @ params["wl"] + params["bl"]


def init_params(key, dim_in, num_edge_type, dim_hidden, dim_out, t=T):
    """Deterministic synthetic init (PyTorch-Linear-style uniform bounds), f32."""
    ks = jax.random.split(key, 5)

    def lin(k, fan_in, fan_out):
        bound = 1.0 / (fan_in ** 0.5)
        kw, kb = jax.random.split(k)
        w = jax.random.uniform(kw, (fan_in, fan_out), F32, -bound, bound)
        b = jax.random.uniform(kb, (1, fan_out), F32, -bound, bound)
        return w, b

    wn, bn = lin(ks[0], dim_in, dim_hidden)          # node_trans
    we, be = lin(ks[1], num_edge_type, dim_hidden)   # edge_trans
    w1, b1 = lin(ks[2], dim_hidden, dim_hidden)      # GINE MLP layer 1
    w2, b2 = lin(ks[3], dim_hidden, dim_hidden)      # GINE MLP layer 2
    wl, bl = lin(ks[4], dim_hidden * t, dim_out)     # final linear
    return dict(wn=wn, bn=bn, we=we, be=be, w1=w1, b1=b1, w2=w2, b2=b2, wl=wl, bl=bl)


if __name__ == "__main__":
    # Small synthetic graph batch (batch.x, batch.edge_index, batch.edge_attr, batch.batch)
    N, E, G = 16, 32, 2
    dim_in, num_edge_type, dim_hidden, dim_out = 8, 4, 32, 16

    key = jax.random.PRNGKey(0)
    k_x, k_src, k_dst, k_ea = jax.random.split(key, 4)
    x = jax.random.normal(k_x, (N, dim_in), F32)                            # batch.x
    src = jax.random.randint(k_src, (E,), 0, N)
    dst = jax.random.randint(k_dst, (E,), 0, N)
    edge_index = jnp.stack([src, dst], axis=0)                              # batch.edge_index [2, E]
    edge_type = jax.random.randint(k_ea, (E,), 0, num_edge_type)
    edge_attr = jax.nn.one_hot(edge_type, num_edge_type, dtype=F32)         # batch.edge_attr [E, K]
    graph_ids = jnp.where(jnp.arange(N) < N // 2, 0, 1).astype(jnp.int32)   # batch.batch

    params = init_params(jax.random.PRNGKey(1), dim_in, num_edge_type, dim_hidden, dim_out)

    res = encoder_forward(x, edge_index, edge_attr, graph_ids, G, params)
    jax.block_until_ready(res)
    assert res.shape == (G, dim_out) and res.dtype == F32

    ref = encoder_reference(x, edge_index, edge_attr, graph_ids, G, params)
    res_np, ref_np = np.asarray(res), np.asarray(ref)
    rel_err = np.linalg.norm(res_np - ref_np) / max(np.linalg.norm(ref_np), 1e-6)
    assert np.isfinite(res_np).all() and rel_err < 8e-2, f"rel_err={rel_err}"
    print("KERNEL_OK")
</pallas_src>

<mosaic_0001>
module attributes {stable_mosaic.version = 11 : i64} {
  func.func @gine_rounds_kernel(%arg0: i32, %arg1: i32, %arg2: memref<128x8xbf16, #tpu.memory_space<vmem>>, %arg3: memref<128x4xbf16, #tpu.memory_space<vmem>>, %arg4: memref<128x1xi32, #tpu.memory_space<vmem>>, %arg5: memref<1x128xi32, #tpu.memory_space<vmem>>, %arg6: memref<8x128xbf16, #tpu.memory_space<vmem>>, %arg7: memref<1x128xf32, #tpu.memory_space<vmem>>, %arg8: memref<4x128xbf16, #tpu.memory_space<vmem>>, %arg9: memref<1x128xf32, #tpu.memory_space<vmem>>, %arg10: memref<128x128xbf16, #tpu.memory_space<vmem>>, %arg11: memref<1x128xf32, #tpu.memory_space<vmem>>, %arg12: memref<128x128xbf16, #tpu.memory_space<vmem>>, %arg13: memref<1x128xf32, #tpu.memory_space<vmem>>, %arg14: memref<1x128x128xbf16, #tpu.memory_space<vmem>>, %arg15: memref<128x128xf32, #tpu.memory_space<vmem>>, %arg16: memref<128x128xbf16, #tpu.memory_space<vmem>>, %arg17: memref<128x128xf32, #tpu.memory_space<vmem>>) attributes {dimension_semantics = [#tpu.dimension_semantics<arbitrary>, #tpu.dimension_semantics<arbitrary>], iteration_bounds = array<i64: 4, 1>, scalar_prefetch = 0 : i64, scratch_operands = 3 : i64, tpu.core_type = #tpu.core_type<tc>, window_params = [{pipeline_mode = #tpu.pipeline_mode<synchronous>, transform_indices = @transform_0, window_bounds = array<i64: 128, 8>}, {transform_indices = @transform_1, window_bounds = array<i64: 128, 4>}, {transform_indices = @transform_2, window_bounds = array<i64: 128, 1>}, {transform_indices = @transform_3, window_bounds = array<i64: 1, 128>}, {pipeline_mode = #tpu.pipeline_mode<synchronous>, transform_indices = @transform_4, window_bounds = array<i64: 8, 128>}, {pipeline_mode = #tpu.pipeline_mode<synchronous>, transform_indices = @transform_5, window_bounds = array<i64: 1, 128>}, {pipeline_mode = #tpu.pipeline_mode<synchronous>, transform_indices = @transform_6, window_bounds = array<i64: 4, 128>}, {pipeline_mode = #tpu.pipeline_mode<synchronous>, transform_indices = @transform_7, window_bounds = array<i64: 1, 128>}, {pipeline_mode = #tpu.pipeline_mode<synchronous>, transform_indices = @transform_8, window_bounds = array<i64: 128, 128>}, {pipeline_mode = #tpu.pipeline_mode<synchronous>, transform_indices = @transform_9, window_bounds = array<i64: 1, 128>}, {pipeline_mode = #tpu.pipeline_mode<synchronous>, transform_indices = @transform_10, window_bounds = array<i64: 128, 128>}, {pipeline_mode = #tpu.pipeline_mode<synchronous>, transform_indices = @transform_11, window_bounds = array<i64: 1, 128>}, {transform_indices = @transform_12, window_bounds = array<i64: 1, 128, 128>}]} {
    %c0_i32 = arith.constant 0 : i32
    %0 = arith.cmpi eq, %arg0, %c0_i32 : i32
    %c0_i32_0 = arith.constant 0 : i32
    %1 = arith.cmpi eq, %arg1, %c0_i32_0 : i32
    %2 = arith.andi %0, %1 : i1
    %3 = arith.extui %2 : i1 to i32
    %c0_i32_1 = arith.constant 0 : i32
    %4 = arith.cmpi ne, %3, %c0_i32_1 : i32
    scf.if %4 {
      %c0_24 = arith.constant 0 : index
      %c0_25 = arith.constant 0 : index
      %41 = vector.load %arg2[%c0_24, %c0_25] : memref<128x8xbf16, #tpu.memory_space<vmem>>, vector<128x8xbf16>
      %c0_26 = arith.constant 0 : index
      %c0_27 = arith.constant 0 : index
      %42 = vector.load %arg6[%c0_26, %c0_27] : memref<8x128xbf16, #tpu.memory_space<vmem>>, vector<8x128xbf16>
      %cst_28 = arith.constant dense<0.000000e+00> : vector<128x128xf32>
      %43 = tpu.matmul %41, %42, %cst_28 {dimension_numbers = #tpu.dot_dimension_numbers<[1], [0], [0], [1], [0, 0, 1, 1], [], []>} : vector<128x8xbf16>, vector<8x128xbf16>, vector<128x128xf32> -> vector<128x128xf32>
      %c0_29 = arith.constant 0 : index
      %c0_30 = arith.constant 0 : index
      %44 = vector.load %arg7[%c0_29, %c0_30] : memref<1x128xf32, #tpu.memory_space<vmem>>, vector<1x128xf32>
      %45 = vector.broadcast %44 : vector<1x128xf32> to vector<128x128xf32>
      %46 = arith.addf %43, %45 : vector<128x128xf32>
      %c0_31 = arith.constant 0 : index
      %c0_32 = arith.constant 0 : index
      %47 = vector.load %arg15[%c0_31, %c0_32] : memref<128x128xf32, #tpu.memory_space<vmem>>, vector<128x128xf32>
      tpu.vector_store %arg15[%c0_31, %c0_32], %46 {strides = array<i32>} : memref<128x128xf32, #tpu.memory_space<vmem>>, vector<128x128xf32>,
      %48 = arith.truncf %46 : vector<128x128xf32> to vector<128x128xbf16>
      %c0_33 = arith.constant 0 : index
      %c0_34 = arith.constant 0 : index
      %49 = vector.load %arg16[%c0_33, %c0_34] : memref<128x128xbf16, #tpu.memory_space<vmem>>, vector<128x128xbf16>
      tpu.vector_store %arg16[%c0_33, %c0_34], %48 {strides = array<i32>} : memref<128x128xbf16, #tpu.memory_space<vmem>>, vector<128x128xbf16>,
    } else {
    }
    %c0_i32_2 = arith.constant 0 : i32
    %5 = arith.cmpi eq, %arg1, %c0_i32_2 : i32
    %6 = arith.extui %5 : i1 to i32
    %c0_i32_3 = arith.constant 0 : i32
    %7 = arith.cmpi ne, %6, %c0_i32_3 : i32
    scf.if %7 {
      %cst_24 = arith.constant 0.000000e+00 : f32
      %41 = vector.broadcast %cst_24 : f32 to vector<128x128xf32>
      %c0_25 = arith.constant 0 : index
      %c0_26 = arith.constant 0 : index
      %42 = vector.load %arg17[%c0_25, %c0_26] : memref<128x128xf32, #tpu.memory_space<vmem>>, vector<128x128xf32>
      tpu.vector_store %arg17[%c0_25, %c0_26], %41 {strides = array<i32>} : memref<128x128xf32, #tpu.memory_space<vmem>>, vector<128x128xf32>,
    } else {
    }
    %c0 = arith.constant 0 : index
    %c0_4 = arith.constant 0 : index
    %8 = vector.load %arg3[%c0, %c0_4] : memref<128x4xbf16, #tpu.memory_space<vmem>>, vector<128x4xbf16>
    %c0_5 = arith.constant 0 : index
    %c0_6 = arith.constant 0 : index
    %9 = vector.load %arg8[%c0_5, %c0_6] : memref<4x128xbf16, #tpu.memory_space<vmem>>, vector<4x128xbf16>
    %cst = arith.constant dense<0.000000e+00> : vector<128x128xf32>
    %10 = tpu.matmul %8, %9, %cst {dimension_numbers = #tpu.dot_dimension_numbers<[1], [0], [0], [1], [0, 0, 1, 1], [], []>} : vector<128x4xbf16>, vector<4x128xbf16>, vector<128x128xf32> -> vector<128x128xf32>
    %c0_7 = arith.constant 0 : index
    %c0_8 = arith.constant 0 : index
    %11 = vector.load %arg9[%c0_7, %c0_8] : memref<1x128xf32, #tpu.memory_space<vmem>>, vector<1x128xf32>
    %12 = vector.broadcast %11 : vector<1x128xf32> to vector<128x128xf32>
    %13 = arith.addf %10, %12 : vector<128x128xf32>
    %c0_9 = arith.constant 0 : index
    %c0_10 = arith.constant 0 : index
    %14 = vector.load %arg4[%c0_9, %c0_10] : memref<128x1xi32, #tpu.memory_space<vmem>>, vector<128x1xi32>
    %15 = tpu.iota {dimensions = array<i32: 1>} : vector<128x128xi32>
    %16 = vector.broadcast %14 : vector<128x1xi32> to vector<128x128xi32>
    %17 = arith.cmpi eq, %16, %15 : vector<128x128xi32>
    %18 = arith.extui %17 : vector<128x128xi1> to vector<128x128xi32>
    %19 = arith.sitofp %18 : vector<128x128xi32> to vector<128x128xf32>
    %20 = arith.truncf %19 : vector<128x128xf32> to vector<128x128xbf16>
    %c0_11 = arith.constant 0 : index
    %c0_12 = arith.constant 0 : index
    %21 = vector.load %arg16[%c0_11, %c0_12] : memref<128x128xbf16, #tpu.memory_space<vmem>>, vector<128x128xbf16>
    %cst_13 = arith.constant dense<0.000000e+00> : vector<128x128xf32>
    %22 = tpu.matmul %20, %21, %cst_13 {dimension_numbers = #tpu.dot_dimension_numbers<[1], [0], [0], [1], [0, 0, 1, 1], [], []>} : vector<128x128xbf16>, vector<128x128xbf16>, vector<128x128xf32> -> vector<128x128xf32>
    %23 = arith.addf %22, %13 : vector<128x128xf32>
    %cst_14 = arith.constant 0.000000e+00 : f32
    %24 = vector.broadcast %cst_14 : f32 to vector<128x128xf32>
    %25 = arith.maximumf %23, %24 : vector<128x128xf32>
    %26 = tpu.iota {dimensions = array<i32: 0>} : vector<128x128xi32>
    %c0_15 = arith.constant 0 : index
    %c0_16 = arith.constant 0 : index
    %27 = vector.load %arg5[%c0_15, %c0_16] : memref<1x128xi32, #tpu.memory_space<vmem>>, vector<1x128xi32>
    %28 = vector.broadcast %27 : vector<1x128xi32> to vector<128x128xi32>
    %29 = arith.cmpi eq, %26, %28 : vector<128x128xi32>
    %30 = arith.extui %29 : vector<128x128xi1> to vector<128x128xi32>
    %31 = arith.sitofp %30 : vector<128x128xi32> to vector<128x128xf32>
    %32 = arith.truncf %31 : vector<128x128xf32> to vector<128x128xbf16>
    %c0_17 = arith.constant 0 : index
    %c0_18 = arith.constant 0 : index
    %33 = vector.load %arg17[%c0_17, %c0_18] : memref<128x128xf32, #tpu.memory_space<vmem>>, vector<128x128xf32>
    %34 = arith.truncf %25 : vector<128x128xf32> to vector<128x128xbf16>
    %cst_19 = arith.constant dense<0.000000e+00> : vector<128x128xf32>
    %35 = tpu.matmul %32, %34, %cst_19 {dimension_numbers = #tpu.dot_dimension_numbers<[1], [0], [0], [1], [0, 0, 1, 1], [], []>} : vector<128x128xbf16>, vector<128x128xbf16>, vector<128x128xf32> -> vector<128x128xf32>
    %36 = arith.addf %33, %35 : vector<128x128xf32>
    %c0_20 = arith.constant 0 : index
    %c0_21 = arith.constant 0 : index
    %37 = vector.load %arg17[%c0_20, %c0_21] : memref<128x128xf32, #tpu.memory_space<vmem>>, vector<128x128xf32>
    tpu.vector_store %arg17[%c0_20, %c0_21], %36 {strides = array<i32>} : memref<128x128xf32, #tpu.memory_space<vmem>>, vector<128x128xf32>,
    %c0_i32_22 = arith.constant 0 : i32
    %38 = arith.cmpi eq, %arg1, %c0_i32_22 : i32
    %39 = arith.extui %38 : i1 to i32
    %c0_i32_23 = arith.constant 0 : i32
    %40 = arith.cmpi ne, %39, %c0_i32_23 : i32
    scf.if %40 {
      %c0_24 = arith.constant 0 : index
      %c0_25 = arith.constant 0 : index
      %41 = vector.load %arg15[%c0_24, %c0_25] : memref<128x128xf32, #tpu.memory_space<vmem>>, vector<128x128xf32>
      %c0_26 = arith.constant 0 : index
      %c0_27 = arith.constant 0 : index
      %42 = vector.load %arg17[%c0_26, %c0_27] : memref<128x128xf32, #tpu.memory_space<vmem>>, vector<128x128xf32>
      %43 = arith.addf %41, %42 : vector<128x128xf32>
      %44 = arith.truncf %43 : vector<128x128xf32> to vector<128x128xbf16>
      %c0_28 = arith.constant 0 : index
      %c0_29 = arith.constant 0 : index
      %45 = vector.load %arg10[%c0_28, %c0_29] : memref<128x128xbf16, #tpu.memory_space<vmem>>, vector<128x128xbf16>
      %cst_30 = arith.constant dense<0.000000e+00> : vector<128x128xf32>
      %46 = tpu.matmul %44, %45, %cst_30 {dimension_numbers = #tpu.dot_dimension_numbers<[1], [0], [0], [1], [0, 0, 1, 1], [], []>} : vector<128x128xbf16>, vector<128x128xbf16>, vector<128x128xf32> -> vector<128x128xf32>
      %c0_31 = arith.constant 0 : index
      %c0_32 = arith.constant 0 : index
      %47 = vector.load %arg11[%c0_31, %c0_32] : memref<1x128xf32, #tpu.memory_space<vmem>>, vector<1x128xf32>
      %48 = vector.broadcast %47 : vector<1x128xf32> to vector<128x128xf32>
      %49 = arith.addf %46, %48 : vector<128x128xf32>
      %cst_33 = arith.constant 0.000000e+00 : f32
      %50 = vector.broadcast %cst_33 : f32 to vector<128x128xf32>
      %51 = arith.maximumf %49, %50 : vector<128x128xf32>
      %52 = arith.truncf %51 : vector<128x128xf32> to vector<128x128xbf16>
      %c0_34 = arith.constant 0 : index
      %c0_35 = arith.constant 0 : index
      %53 = vector.load %arg12[%c0_34, %c0_35] : memref<128x128xbf16, #tpu.memory_space<vmem>>, vector<128x128xbf16>
      %cst_36 = arith.constant dense<0.000000e+00> : vector<128x128xf32>
      %54 = tpu.matmul %52, %53, %cst_36 {dimension_numbers = #tpu.dot_dimension_numbers<[1], [0], [0], [1], [0, 0, 1, 1], [], []>} : vector<128x128xbf16>, vector<128x128xbf16>, vector<128x128xf32> -> vector<128x128xf32>
      %c0_37 = arith.constant 0 : index
      %c0_38 = arith.constant 0 : index
      %55 = vector.load %arg13[%c0_37, %c0_38] : memref<1x128xf32, #tpu.memory_space<vmem>>, vector<1x128xf32>
      %56 = vector.broadcast %55 : vector<1x128xf32> to vector<128x128xf32>
      %57 = arith.addf %54, %56 : vector<128x128xf32>
      %c0_39 = arith.constant 0 : index
      %c0_40 = arith.constant 0 : index
      %58 = vector.load %arg15[%c0_39, %c0_40] : memref<128x128xf32, #tpu.memory_space<vmem>>, vector<128x128xf32>
      tpu.vector_store %arg15[%c0_39, %c0_40], %57 {strides = array<i32>} : memref<128x128xf32, #tpu.memory_space<vmem>>, vector<128x128xf32>,
      %59 = arith.truncf %57 : vector<128x128xf32> to vector<128x128xbf16>
      %c0_41 = arith.constant 0 : index
      %c0_42 = arith.constant 0 : index
      %60 = vector.load %arg16[%c0_41, %c0_42] : memref<128x128xbf16, #tpu.memory_space<vmem>>, vector<128x128xbf16>
      tpu.vector_store %arg16[%c0_41, %c0_42], %59 {strides = array<i32>} : memref<128x128xbf16, #tpu.memory_space<vmem>>, vector<128x128xbf16>,
      %61 = arith.truncf %57 : vector<128x128xf32> to vector<128x128xbf16>
      %c0_43 = arith.constant 0 : index
      %c0_44 = arith.constant 0 : index
      %c0_45 = arith.constant 0 : index
      %62 = vector.load %arg14[%c0_43, %c0_44, %c0_45] : memref<1x128x128xbf16, #tpu.memory_space<vmem>>, vector<1x128x128xbf16>
      %63 = vector.shape_cast %62 : vector<1x128x128xbf16> to vector<128x128xbf16>
      %64 = vector.shape_cast %61 : vector<128x128xbf16> to vector<1x128x128xbf16>
      tpu.vector_store %arg14[%c0_43, %c0_44, %c0_45], %64 {strides = array<i32>} : memref<1x128x128xbf16, #tpu.memory_space<vmem>>, vector<1x128x128xbf16>,
    } else {
    }
    return
  }
  func.func @transform_0(%arg0: i32, %arg1: i32) -> (i32, i32) {
    %c0_i32 = arith.constant 0 : i32
    %c0_i32_0 = arith.constant 0 : i32
    %c0_i32_1 = arith.constant 0 : i32
    return %c0_i32, %c0_i32_0 : i32, i32
  }
  func.func @transform_1(%arg0: i32, %arg1: i32) -> (i32, i32) {
    %c0_i32 = arith.constant 0 : i32
    %c0_i32_0 = arith.constant 0 : i32
    return %arg1, %c0_i32 : i32, i32
  }
  func.func @transform_2(%arg0: i32, %arg1: i32) -> (i32, i32) {
    %c0_i32 = arith.constant 0 : i32
    %c0_i32_0 = arith.constant 0 : i32
    return %arg1, %c0_i32 : i32, i32
  }
  func.func @transform_3(%arg0: i32, %arg1: i32) -> (i32, i32) {
    %c0_i32 = arith.constant 0 : i32
    %c0_i32_0 = arith.constant 0 : i32
    return %c0_i32, %arg1 : i32, i32
  }
  func.func @transform_4(%arg0: i32, %arg1: i32) -> (i32, i32) {
    %c0_i32 = arith.constant 0 : i32
    %c0_i32_0 = arith.constant 0 : i32
    %c0_i32_1 = arith.constant 0 : i32
    return %c0_i32, %c0_i32_0 : i32, i32
  }
  func.func @transform_5(%arg0: i32, %arg1: i32) -> (i32, i32) {
    %c0_i32 = arith.constant 0 : i32
    %c0_i32_0 = arith.constant 0 : i32
    %c0_i32_1 = arith.constant 0 : i32
    return %c0_i32, %c0_i32_0 : i32, i32
  }
  func.func @transform_6(%arg0: i32, %arg1: i32) -> (i32, i32) {
    %c0_i32 = arith.constant 0 : i32
    %c0_i32_0 = arith.constant 0 : i32
    %c0_i32_1 = arith.constant 0 : i32
    return %c0_i32, %c0_i32_0 : i32, i32
  }
  func.func @transform_7(%arg0: i32, %arg1: i32) -> (i32, i32) {
    %c0_i32 = arith.constant 0 : i32
    %c0_i32_0 = arith.constant 0 : i32
    %c0_i32_1 = arith.constant 0 : i32
    return %c0_i32, %c0_i32_0 : i32, i32
  }
  func.func @transform_8(%arg0: i32, %arg1: i32) -> (i32, i32) {
    %c0_i32 = arith.constant 0 : i32
    %c0_i32_0 = arith.constant 0 : i32
    %c0_i32_1 = arith.constant 0 : i32
    return %c0_i32, %c0_i32_0 : i32, i32
  }
  func.func @transform_9(%arg0: i32, %arg1: i32) -> (i32, i32) {
    %c0_i32 = arith.constant 0 : i32
    %c0_i32_0 = arith.constant 0 : i32
    %c0_i32_1 = arith.constant 0 : i32
    return %c0_i32, %c0_i32_0 : i32, i32
  }
  func.func @transform_10(%arg0: i32, %arg1: i32) -> (i32, i32) {
    %c0_i32 = arith.constant 0 : i32
    %c0_i32_0 = arith.constant 0 : i32
    %c0_i32_1 = arith.constant 0 : i32
    return %c0_i32, %c0_i32_0 : i32, i32
  }
  func.func @transform_11(%arg0: i32, %arg1: i32) -> (i32, i32) {
    %c0_i32 = arith.constant 0 : i32
    %c0_i32_0 = arith.constant 0 : i32
    %c0_i32_1 = arith.constant 0 : i32
    return %c0_i32, %c0_i32_0 : i32, i32
  }
  func.func @transform_12(%arg0: i32, %arg1: i32) -> (i32, i32, i32) {
    %c0_i32 = arith.constant 0 : i32
    %c0_i32_0 = arith.constant 0 : i32
    %c0_i32_1 = arith.constant 0 : i32
    return %arg0, %c0_i32, %c0_i32_0 : i32, i32, i32
  }
}

</mosaic_0001>

<llo_original>
// kernel: tpu_custom_call.1
$region0: #{tpu_custom_call.1}
  #allocation0 [shape = 'u32[]', space=smem, size = 0x4, offset = 0x4, fixed_abs, tag = 'smem constant byte address 0x4 - core index']
  #allocation1 [shape = 'u32[144,128]{1,0:T(1,128)}', space=vmem, size = 0x12000, scoped, tag = 'internal scratch']
  #allocation2 [shape = 'f32[128,128]{1,0:T(8,128)}', space=vmem, size = 0x10000, scoped, tag = 'scratch operand']
  #allocation3 [shape = 'bf16[128,128]{1,0:T(16,128)(2,1)}', space=vmem, size = 0x8000, scoped, tag = 'scratch operand']
  #allocation4 [shape = 'f32[128,128]{1,0:T(8,128)}', space=vmem, size = 0x10000, scoped, tag = 'scratch operand']
  %s0 = inlined_call_operand.vmem [shape: bf16[128,8], index: 0, kind: input, shape index: {}]
  %s1 = inlined_call_operand.vmem [shape: bf16[128,4], index: 1, kind: input, shape index: {}]
  %s2 = inlined_call_operand.vmem [shape: s32[128,1], index: 2, kind: input, shape index: {}]
  %s3 = inlined_call_operand.vmem [shape: s32[1,128], index: 3, kind: input, shape index: {}]
  %s4 = inlined_call_operand.vmem [shape: bf16[8,128], index: 4, kind: input, shape index: {}]
  %s5 = inlined_call_operand.vmem [shape: f32[1,128], index: 5, kind: input, shape index: {}]
  %s6 = inlined_call_operand.vmem [shape: bf16[4,128], index: 6, kind: input, shape index: {}]
  %s7 = inlined_call_operand.vmem [shape: f32[1,128], index: 7, kind: input, shape index: {}]
  %s8 = inlined_call_operand.vmem [shape: bf16[128,128], index: 8, kind: input, shape index: {}]
  %s9 = inlined_call_operand.vmem [shape: f32[1,128], index: 9, kind: input, shape index: {}]
  %s10 = inlined_call_operand.vmem [shape: bf16[128,128], index: 10, kind: input, shape index: {}]
  %s11 = inlined_call_operand.vmem [shape: f32[1,128], index: 11, kind: input, shape index: {}]
  %s12 = inlined_call_operand.hbm [shape: bf16[4,128,128], index: 12, kind: output, shape index: {}]
  %s13 = sld [smem:[#allocation0]]
  $region93: #{tpu_custom_call.1} parent=0
    _
  %s15 = ssub.s32 1, %s13
  %s16 = scalar_select 0, %s15, %s13
  $region1: #{tpu_custom_call.1} parent=0
    #allocation5 [shape = 'u8[65536]{0}', space=vmem, size = 0x10000, scoped, tag = 'output window, operand 0']
    #allocation6 [shape = 's32[2]{0}', space=sflag, size = 0x8, scoped, tag = 'scoped memory for tpu_custom_call.1']
    %17 = vsyncpa [#allocation6], 0
    %s18 = scalar_lea.sflag [#allocation6], 1
    %19 = vsyncpa %s18, 0
    loop: start=0, step=1, limit=6
    $region2: #{tpu_custom_call.1} parent=1 // loop_pre_header
      _
    $region3: #{tpu_custom_call.1} parent=1 // loop_header
      %s21 = sphi 0, %s25
      %p22 = scmp.ge.s32.totalorder %s21, 6
      %s28 = sphi 0, %s40
      %s29 = sphi 0, %s36
      %s30 = sphi 0, %s28
      %s31 = sphi 0, %s29
      %s32 = sphi 0, %s30
      %s33 = sphi 0, %s31
      %s41 = sphi 0, %s41
      %s43 = sphi 0, %s41
      %s44 = sphi 0, %s43
      %s58 = sphi 0, %s44
      %s64 = sphi 0, %s66
      %s67 = sphi 0, %s64
      %s68 = sphi 0, %s67
      %s84 = sphi 0, %s68
      %s90 = sphi 0, %s92
      %s93 = sphi 0, %s90
      %s94 = sphi 0, %s93
      %s110 = sphi 0, %s94
      %s116 = sphi 0, %s118
      %s119 = sphi 0, %s116
      %s120 = sphi 0, %s119
      %s136 = sphi 0, %s120
      %s140 = sphi 0, %s140
      %s142 = sphi 0, %s140
      %s143 = sphi 0, %s142
      %s157 = sphi 0, %s143
      %s161 = sphi 0, %s161
      %s163 = sphi 0, %s161
      %s164 = sphi 0, %s163
      %s178 = sphi 0, %s164
      %s182 = sphi 0, %s182
      %s184 = sphi 0, %s182
      %s185 = sphi 0, %s184
      %s199 = sphi 0, %s185
      %s203 = sphi 0, %s203
      %s205 = sphi 0, %s203
      %s206 = sphi 0, %s205
      %s220 = sphi 0, %s206
      %s224 = sphi 0, %s224
      %s226 = sphi 0, %s224
      %s227 = sphi 0, %s226
      %s241 = sphi 0, %s227
      %s245 = sphi 0, %s245
      %s247 = sphi 0, %s245
      %s248 = sphi 0, %s247
      %s262 = sphi 0, %s248
      %s266 = sphi 0, %s266
      %s268 = sphi 0, %s266
      %s269 = sphi 0, %s268
      %s283 = sphi 0, %s269
      %s287 = sphi 0, %s287
      %s289 = sphi 0, %s287
      %s290 = sphi 0, %s289
      %s304 = sphi 0, %s290
      %s310 = sphi 0, %s312
      %s313 = sphi 0, %s310
      %s314 = sphi 0, %s313
      %s330 = sphi 0, %s314
    $region4: #{tpu_custom_call.1} parent=1 // loop_header_branch
      %24 = sbr.rel (%p22) target = $region8
    $region5: #{tpu_custom_call.1} parent=1 // loop_body
      %s26 = ssub.s32 %s21, 1
      %s27 = ssub.s32 %s21, 2
      %s34 = sadd.s32 1, %s29
      %p35 = scmp.ge.s32.totalorder %s34, 1
      %s36 = scalar_select %p35, 0, %s34
      %s37 = sadd.s32 1, %s28
      %s38 = scalar_select %p35, %s37, %s28
      %p39 = scmp.ge.s32.totalorder %s38, 4
      %s40 = scalar_select %p39, 0, %s38
      %s42 = sadd.s32 %s41, 1
      %p45 = scmp.eq.s32.totalorder %s21, 3
      %p46 = scmp.ne.s32.totalorder %s41, %s43
      %p47 = scmp.eq.s32.totalorder %s21, 0
      %p48 = por %p46, %p47
      %p49 = scmp.ne.s32.totalorder %s41, %s43
      %p50 = scmp.eq.s32.totalorder %s26, 3
      %p51 = por %p49, %p50
      %p52 = scmp.ne.s32.totalorder %s43, %s44
      %p53 = scmp.eq.s32.totalorder %s26, 0
      %p54 = por %p52, %p53
      %p55 = scmp.ne.s32.totalorder %s43, %s44
      %p56 = scmp.eq.s32.totalorder %s27, 3
      %p57 = por %p55, %p56
      %p59 = scmp.ne.s32.totalorder %s44, %s58
      %p60 = scmp.eq.s32.totalorder %s27, 0
      %p61 = por %p59, %p60
      %s62 = ssub.s32 %s29, %s36
      %p63 = scmp.eq.s32.totalorder %s62, 0
      %s65 = sadd.s32 %s64, 1
      %s66 = scalar_select %p63, %s64, %s65
      %p69 = pneg %p63
      %p70 = scmp.eq.s32.totalorder %s21, 3
      %p71 = por %p69, %p70
      %p72 = scmp.ne.s32.totalorder %s64, %s67
      %p73 = scmp.eq.s32.totalorder %s21, 0
      %p74 = por %p72, %p73
      %p75 = scmp.ne.s32.totalorder %s64, %s67
      %p76 = scmp.eq.s32.totalorder %s26, 3
      %p77 = por %p75, %p76
      %p78 = scmp.ne.s32.totalorder %s67, %s68
      %p79 = scmp.eq.s32.totalorder %s26, 0
      %p80 = por %p78, %p79
      %p81 = scmp.ne.s32.totalorder %s67, %s68
      %p82 = scmp.eq.s32.totalorder %s27, 3
      %p83 = por %p81, %p82
      %p85 = scmp.ne.s32.totalorder %s68, %s84
      %p86 = scmp.eq.s32.totalorder %s27, 0
      %p87 = por %p85, %p86
      %s88 = ssub.s32 %s29, %s36
      %p89 = scmp.eq.s32.totalorder %s88, 0
      %s91 = sadd.s32 %s90, 1
      %s92 = scalar_select %p89, %s90, %s91
      %p95 = pneg %p89
      %p96 = scmp.eq.s32.totalorder %s21, 3
      %p97 = por %p95, %p96
      %p98 = scmp.ne.s32.totalorder %s90, %s93
      %p99 = scmp.eq.s32.totalorder %s21, 0
      %p100 = por %p98, %p99
      %p101 = scmp.ne.s32.totalorder %s90, %s93
      %p102 = scmp.eq.s32.totalorder %s26, 3
      %p103 = por %p101, %p102
      %p104 = scmp.ne.s32.totalorder %s93, %s94
      %p105 = scmp.eq.s32.totalorder %s26, 0
      %p106 = por %p104, %p105
      %p107 = scmp.ne.s32.totalorder %s93, %s94
      %p108 = scmp.eq.s32.totalorder %s27, 3
      %p109 = por %p107, %p108
      %p111 = scmp.ne.s32.totalorder %s94, %s110
      %p112 = scmp.eq.s32.totalorder %s27, 0
      %p113 = por %p111, %p112
      %s114 = ssub.s32 %s29, %s36
      %p115 = scmp.eq.s32.totalorder %s114, 0
      %s117 = sadd.s32 %s116, 1
      %s118 = scalar_select %p115, %s116, %s117
      %p121 = pneg %p115
      %p122 = scmp.eq.s32.totalorder %s21, 3
      %p123 = por %p121, %p122
      %p124 = scmp.ne.s32.totalorder %s116, %s119
      %p125 = scmp.eq.s32.totalorder %s21, 0
      %p126 = por %p124, %p125
      %p127 = scmp.ne.s32.totalorder %s116, %s119
      %p128 = scmp.eq.s32.totalorder %s26, 3
      %p129 = por %p127, %p128
      %p130 = scmp.ne.s32.totalorder %s119, %s120
      %p131 = scmp.eq.s32.totalorder %s26, 0
      %p132 = por %p130, %p131
      %p133 = scmp.ne.s32.totalorder %s119, %s120
      %p134 = scmp.eq.s32.totalorder %s27, 3
      %p135 = por %p133, %p134
      %p137 = scmp.ne.s32.totalorder %s120, %s136
      %p138 = scmp.eq.s32.totalorder %s27, 0
      %p139 = por %p137, %p138
      %s141 = sadd.s32 %s140, 1
      %p144 = scmp.eq.s32.totalorder %s21, 3
      %p145 = scmp.ne.s32.totalorder %s140, %s142
      %p146 = scmp.eq.s32.totalorder %s21, 0
      %p147 = por %p145, %p146
      %p148 = scmp.ne.s32.totalorder %s140, %s142
      %p149 = scmp.eq.s32.totalorder %s26, 3
      %p150 = por %p148, %p149
      %p151 = scmp.ne.s32.totalorder %s142, %s143
      %p152 = scmp.eq.s32.totalorder %s26, 0
      %p153 = por %p151, %p152
      %p154 = scmp.ne.s32.totalorder %s142, %s143
      %p155 = scmp.eq.s32.totalorder %s27, 3
      %p156 = por %p154, %p155
      %p158 = scmp.ne.s32.totalorder %s143, %s157
      %p159 = scmp.eq.s32.totalorder %s27, 0
      %p160 = por %p158, %p159
      %s162 = sadd.s32 %s161, 1
      %p165 = scmp.eq.s32.totalorder %s21, 3
      %p166 = scmp.ne.s32.totalorder %s161, %s163
      %p167 = scmp.eq.s32.totalorder %s21, 0
      %p168 = por %p166, %p167
      %p169 = scmp.ne.s32.totalorder %s161, %s163
      %p170 = scmp.eq.s32.totalorder %s26, 3
      %p171 = por %p169, %p170
      %p172 = scmp.ne.s32.totalorder %s163, %s164
      %p173 = scmp.eq.s32.totalorder %s26, 0
      %p174 = por %p172, %p173
      %p175 = scmp.ne.s32.totalorder %s163, %s164
      %p176 = scmp.eq.s32.totalorder %s27, 3
      %p177 = por %p175, %p176
      %p179 = scmp.ne.s32.totalorder %s164, %s178
      %p180 = scmp.eq.s32.totalorder %s27, 0
      %p181 = por %p179, %p180
      %s183 = sadd.s32 %s182, 1
      %p186 = scmp.eq.s32.totalorder %s21, 3
      %p187 = scmp.ne.s32.totalorder %s182, %s184
      %p188 = scmp.eq.s32.totalorder %s21, 0
      %p189 = por %p187, %p188
      %p190 = scmp.ne.s32.totalorder %s182, %s184
      %p191 = scmp.eq.s32.totalorder %s26, 3
      %p192 = por %p190, %p191
      %p193 = scmp.ne.s32.totalorder %s184, %s185
      %p194 = scmp.eq.s32.totalorder %s26, 0
      %p195 = por %p193, %p194
      %p196 = scmp.ne.s32.totalorder %s184, %s185
      %p197 = scmp.eq.s32.totalorder %s27, 3
      %p198 = por %p196, %p197
      %p200 = scmp.ne.s32.totalorder %s185, %s199
      %p201 = scmp.eq.s32.totalorder %s27, 0
      %p202 = por %p200, %p201
      %s204 = sadd.s32 %s203, 1
      %p207 = scmp.eq.s32.totalorder %s21, 3
      %p208 = scmp.ne.s32.totalorder %s203, %s205
      %p209 = scmp.eq.s32.totalorder %s21, 0
      %p210 = por %p208, %p209
      %p211 = scmp.ne.s32.totalorder %s203, %s205
      %p212 = scmp.eq.s32.totalorder %s26, 3
      %p213 = por %p211, %p212
      %p214 = scmp.ne.s32.totalorder %s205, %s206
      %p215 = scmp.eq.s32.totalorder %s26, 0
      %p216 = por %p214, %p215
      %p217 = scmp.ne.s32.totalorder %s205, %s206
      %p218 = scmp.eq.s32.totalorder %s27, 3
      %p219 = por %p217, %p218
      %p221 = scmp.ne.s32.totalorder %s206, %s220
      %p222 = scmp.eq.s32.totalorder %s27, 0
      %p223 = por %p221, %p222
      %s225 = sadd.s32 %s224, 1
      %p228 = scmp.eq.s32.totalorder %s21, 3
      %p229 = scmp.ne.s32.totalorder %s224, %s226
      %p230 = scmp.eq.s32.totalorder %s21, 0
      %p231 = por %p229, %p230
      %p232 = scmp.ne.s32.totalorder %s224, %s226
      %p233 = scmp.eq.s32.totalorder %s26, 3
      %p234 = por %p232, %p233
      %p235 = scmp.ne.s32.totalorder %s226, %s227
      %p236 = scmp.eq.s32.totalorder %s26, 0
      %p237 = por %p235, %p236
      %p238 = scmp.ne.s32.totalorder %s226, %s227
      %p239 = scmp.eq.s32.totalorder %s27, 3
      %p240 = por %p238, %p239
      %p242 = scmp.ne.s32.totalorder %s227, %s241
      %p243 = scmp.eq.s32.totalorder %s27, 0
      %p244 = por %p242, %p243
      %s246 = sadd.s32 %s245, 1
      %p249 = scmp.eq.s32.totalorder %s21, 3
      %p250 = scmp.ne.s32.totalorder %s245, %s247
      %p251 = scmp.eq.s32.totalorder %s21, 0
      %p252 = por %p250, %p251
      %p253 = scmp.ne.s32.totalorder %s245, %s247
      %p254 = scmp.eq.s32.totalorder %s26, 3
      %p255 = por %p253, %p254
      %p256 = scmp.ne.s32.totalorder %s247, %s248
      %p257 = scmp.eq.s32.totalorder %s26, 0
      %p258 = por %p256, %p257
      %p259 = scmp.ne.s32.totalorder %s247, %s248
      %p260 = scmp.eq.s32.totalorder %s27, 3
      %p261 = por %p259, %p260
      %p263 = scmp.ne.s32.totalorder %s248, %s262
      %p264 = scmp.eq.s32.totalorder %s27, 0
      %p265 = por %p263, %p264
      %s267 = sadd.s32 %s266, 1
      %p270 = scmp.eq.s32.totalorder %s21, 3
      %p271 = scmp.ne.s32.totalorder %s266, %s268
      %p272 = scmp.eq.s32.totalorder %s21, 0
      %p273 = por %p271, %p272
      %p274 = scmp.ne.s32.totalorder %s266, %s268
      %p275 = scmp.eq.s32.totalorder %s26, 3
      %p276 = por %p274, %p275
      %p277 = scmp.ne.s32.totalorder %s268, %s269
      %p278 = scmp.eq.s32.totalorder %s26, 0
      %p279 = por %p277, %p278
      %p280 = scmp.ne.s32.totalorder %s268, %s269
      %p281 = scmp.eq.s32.totalorder %s27, 3
      %p282 = por %p280, %p281
      %p284 = scmp.ne.s32.totalorder %s269, %s283
      %p285 = scmp.eq.s32.totalorder %s27, 0
      %p286 = por %p284, %p285
      %s288 = sadd.s32 %s287, 1
      %p291 = scmp.eq.s32.totalorder %s21, 3
      %p292 = scmp.ne.s32.totalorder %s287, %s289
      %p293 = scmp.eq.s32.totalorder %s21, 0
      %p294 = por %p292, %p293
      %p295 = scmp.ne.s32.totalorder %s287, %s289
      %p296 = scmp.eq.s32.totalorder %s26, 3
      %p297 = por %p295, %p296
      %p298 = scmp.ne.s32.totalorder %s289, %s290
      %p299 = scmp.eq.s32.totalorder %s26, 0
      %p300 = por %p298, %p299
      %p301 = scmp.ne.s32.totalorder %s289, %s290
      %p302 = scmp.eq.s32.totalorder %s27, 3
      %p303 = por %p301, %p302
      %p305 = scmp.ne.s32.totalorder %s290, %s304
      %p306 = scmp.eq.s32.totalorder %s27, 0
      %p307 = por %p305, %p306
      %s308 = ssub.s32 %s28, %s40
      %p309 = scmp.eq.s32.totalorder %s308, 0
      %s311 = sadd.s32 %s310, 1
      %s312 = scalar_select %p309, %s310, %s311
      %p315 = pneg %p309
      %p316 = scmp.eq.s32.totalorder %s21, 3
      %p317 = por %p315, %p316
      %p318 = scmp.ne.s32.totalorder %s310, %s313
      %p319 = scmp.eq.s32.totalorder %s21, 0
      %p320 = por %p318, %p319
      %p321 = scmp.ne.s32.totalorder %s310, %s313
      %p322 = scmp.eq.s32.totalorder %s26, 3
      %p323 = por %p321, %p322
      %p324 = scmp.ne.s32.totalorder %s313, %s314
      %p325 = scmp.eq.s32.totalorder %s26, 0
      %p326 = por %p324, %p325
      %p327 = scmp.ne.s32.totalorder %s313, %s314
      %p328 = scmp.eq.s32.totalorder %s27, 3
      %p329 = por %p327, %p328
      %p331 = scmp.ne.s32.totalorder %s314, %s330
      %p332 = scmp.eq.s32.totalorder %s27, 0
      %p333 = por %p331, %p332
      %p334 = scmp.le.s32.totalorder 1, %s21
      %p335 = scmp.lt.s32.totalorder %s21, 5
      %p336 = pnand %p334, %p335
      %p337 = pneg %p336
      // Predicated region
      $region9: #{tpu_custom_call.1} parent=5 // pred_check
        _
      $region10: #{tpu_custom_call.1} parent=5 // pred_check_branch
        %339 = sbr.rel (%p336) target = $region12
      $region11: #{tpu_custom_call.1} parent=5 // pred_region
        %s340 = ssub.s32 %s21, 1
        // Predicated region
        $region13: #{tpu_custom_call.1} parent=11 // pred_check
          %p341 = pneg %p54
        $region14: #{tpu_custom_call.1} parent=11 // pred_check_branch
          %343 = sbr.rel (%p341) target = $region16
        $region15: #{tpu_custom_call.1} parent=11 // pred_region
          _
        $region16: #{tpu_custom_call.1} parent=11 // pred_fallthru
          _
        // Predicated region
        $region17: #{tpu_custom_call.1} parent=11 // pred_check
          %p344 = pneg %p80
        $region18: #{tpu_custom_call.1} parent=11 // pred_check_branch
          %346 = sbr.rel (%p344) target = $region20
        $region19: #{tpu_custom_call.1} parent=11 // pred_region
          %s347 = smul.u32 16, %s31
          %p348 = scmp.lt.s32.totalorder %s347, 15
          %s349 = scalar_select %p348, %s347, 15
          %s350 = smul.addr %s349, 4
          %s351 = scalar_lea.vmem %s1, %s350
          %s352 = smul.u32 16, %s31
        $region20: #{tpu_custom_call.1} parent=11 // pred_fallthru
          _
        // Predicated region
        $region21: #{tpu_custom_call.1} parent=11 // pred_check
          %p353 = pneg %p106
        $region22: #{tpu_custom_call.1} parent=11 // pred_check_branch
          %355 = sbr.rel (%p353) target = $region24
        $region23: #{tpu_custom_call.1} parent=11 // pred_region
          %s356 = smul.u32 16, %s31
          %p357 = scmp.lt.s32.totalorder %s356, 15
          %s358 = scalar_select %p357, %s356, 15
          %s359 = smul.addr %s358, 8
          %s360 = scalar_lea.vmem %s2, %s359
          %s361 = smul.u32 16, %s31
        $region24: #{tpu_custom_call.1} parent=11 // pred_fallthru
          _
        // Predicated region
        $region25: #{tpu_custom_call.1} parent=11 // pred_check
          %p362 = pneg %p132
        $region26: #{tpu_custom_call.1} parent=11 // pred_check_branch
          %364 = sbr.rel (%p362) target = $region28
        $region27: #{tpu_custom_call.1} parent=11 // pred_region
          %p365 = scmp.lt.s32.totalorder %s31, 0
          %s366 = scalar_select %p365, %s31, 0
          %s367 = scalar_lea.vmem %s3, %s366
        $region28: #{tpu_custom_call.1} parent=11 // pred_fallthru
          _
        // Predicated region
        $region29: #{tpu_custom_call.1} parent=11 // pred_check
          %p368 = pneg %p153
        $region30: #{tpu_custom_call.1} parent=11 // pred_check_branch
          %370 = sbr.rel (%p368) target = $region32
        $region31: #{tpu_custom_call.1} parent=11 // pred_region
          _
        $region32: #{tpu_custom_call.1} parent=11 // pred_fallthru
          _
        // Predicated region
        $region33: #{tpu_custom_call.1} parent=11 // pred_check
          %p371 = pneg %p174
        $region34: #{tpu_custom_call.1} parent=11 // pred_check_branch
          %373 = sbr.rel (%p371) target = $region36
        $region35: #{tpu_custom_call.1} parent=11 // pred_region
          _
        $region36: #{tpu_custom_call.1} parent=11 // pred_fallthru
          _
        // Predicated region
        $region37: #{tpu_custom_call.1} parent=11 // pred_check
          %p374 = pneg %p195
        $region38: #{tpu_custom_call.1} parent=11 // pred_check_branch
          %376 = sbr.rel (%p374) target = $region40
        $region39: #{tpu_custom_call.1} parent=11 // pred_region
          _
        $region40: #{tpu_custom_call.1} parent=11 // pred_fallthru
          _
        // Predicated region
        $region41: #{tpu_custom_call.1} parent=11 // pred_check
          %p377 = pneg %p216
        $region42: #{tpu_custom_call.1} parent=11 // pred_check_branch
          %379 = sbr.rel (%p377) target = $region44
        $region43: #{tpu_custom_call.1} parent=11 // pred_region
          _
        $region44: #{tpu_custom_call.1} parent=11 // pred_fallthru
          _
        // Predicated region
        $region45: #{tpu_custom_call.1} parent=11 // pred_check
          %p380 = pneg %p237
        $region46: #{tpu_custom_call.1} parent=11 // pred_check_branch
          %382 = sbr.rel (%p380) target = $region48
        $region47: #{tpu_custom_call.1} parent=11 // pred_region
          _
        $region48: #{tpu_custom_call.1} parent=11 // pred_fallthru
          _
        // Predicated region
        $region49: #{tpu_custom_call.1} parent=11 // pred_check
          %p383 = pneg %p258
        $region50: #{tpu_custom_call.1} parent=11 // pred_check_branch
          %385 = sbr.rel (%p383) target = $region52
        $region51: #{tpu_custom_call.1} parent=11 // pred_region
          _
        $region52: #{tpu_custom_call.1} parent=11 // pred_fallthru
          _
        // Predicated region
        $region53: #{tpu_custom_call.1} parent=11 // pred_check
          %p386 = pneg %p279
        $region54: #{tpu_custom_call.1} parent=11 // pred_check_branch
          %388 = sbr.rel (%p386) target = $region56
        $region55: #{tpu_custom_call.1} parent=11 // pred_region
          _
        $region56: #{tpu_custom_call.1} parent=11 // pred_fallthru
          _
        // Predicated region
        $region57: #{tpu_custom_call.1} parent=11 // pred_check
          %p389 = pneg %p300
        $region58: #{tpu_custom_call.1} parent=11 // pred_check_branch
          %391 = sbr.rel (%p389) target = $region60
        $region59: #{tpu_custom_call.1} parent=11 // pred_region
          _
        $region60: #{tpu_custom_call.1} parent=11 // pred_fallthru
          _
      $region12: #{tpu_custom_call.1} parent=5 // pred_fallthru
        _
      %p392 = scmp.lt.s32.totalorder %s21, 4
      // Predicated region
      $region61: #{tpu_custom_call.1} parent=5 // pred_check
        %p393 = pneg %p392
      $region62: #{tpu_custom_call.1} parent=5 // pred_check_branch
        %395 = sbr.rel (%p393) target = $region64
      $region63: #{tpu_custom_call.1} parent=5 // pred_region
        _
      $region64: #{tpu_custom_call.1} parent=5 // pred_fallthru
        _
      %p396 = scmp.le.s32.totalorder 1, %s21
      %p397 = scmp.lt.s32.totalorder %s21, 5
      %p398 = pnand %p396, %p397
      %p399 = pneg %p398
      // Predicated region
      $region65: #{tpu_custom_call.1} parent=5 // pred_check
        _
      $region66: #{tpu_custom_call.1} parent=5 // pred_check_branch
        %401 = sbr.rel (%p398) target = $region68
      $region67: #{tpu_custom_call.1} parent=5 // pred_region
        %s402 = ssub.s32 %s21, 1
        %p403 = pneg %p54
        %p404 = pneg %p51
        %s405 = smul.u32 16, %s31
        %p406 = scmp.lt.s32.totalorder %s405, 15
        %s407 = scalar_select %p406, %s405, 15
        %s408 = smul.addr %s407, 4
        %s409 = scalar_lea.vmem %s1, %s408
        %p410 = pneg %p80
        %p411 = pneg %p77
        %s412 = smul.u32 16, %s31
        %p413 = scmp.lt.s32.totalorder %s412, 15
        %s414 = scalar_select %p413, %s412, 15
        %s415 = smul.addr %s414, 8
        %s416 = scalar_lea.vmem %s2, %s415
        %p417 = pneg %p106
        %p418 = pneg %p103
        %p419 = scmp.lt.s32.totalorder %s31, 0
        %s420 = scalar_select %p419, %s31, 0
        %s421 = scalar_lea.vmem %s3, %s420
        %p422 = pneg %p132
        %p423 = pneg %p129
        %p424 = pneg %p153
        %p425 = pneg %p150
        %p426 = pneg %p174
        %p427 = pneg %p171
        %p428 = pneg %p195
        %p429 = pneg %p192
        %p430 = pneg %p216
        %p431 = pneg %p213
        %p432 = pneg %p237
        %p433 = pneg %p234
        %p434 = pneg %p258
        %p435 = pneg %p255
        %p436 = pneg %p279
        %p437 = pneg %p276
        %p438 = pneg %p300
        %p439 = pneg %p297
        %p440 = pneg %p326
        %p441 = pneg %p323
        %s442 = sand.u32 %s313, 1
        %s443 = scalar_lea.sflag [#allocation6], %s442
        %s444 = sand.u32 %s313, 1
        %s445 = smul.addr %s444, 64
        %s446 = scalar_lea.vmem [#allocation5], %s445
        %s447 = smul.u32 16, %s31
        %p448 = scmp.lt.s32.totalorder %s447, 15
        %s449 = scalar_select %p448, %s447, 15
        %s450 = smul.addr %s449, 4
        %s451 = scalar_lea.vmem %s1, %s450
        %s452 = smul.u32 16, %s31
        %s453 = smul.u32 16, %s31
        %p454 = scmp.lt.s32.totalorder %s453, 15
        %s455 = scalar_select %p454, %s453, 15
        %s456 = smul.addr %s455, 8
        %s457 = scalar_lea.vmem %s2, %s456
        %s458 = smul.u32 16, %s31
        %p459 = scmp.lt.s32.totalorder %s31, 0
        %s460 = scalar_select %p459, %s31, 0
        %s461 = scalar_lea.vmem %s3, %s460
        %p463 = scmp.eq.s32.totalorder %s30, 0
        %p464 = scmp.eq.s32.totalorder %s31, 0
        %p465 = pnand %p463, %p464
        %p466 = pneg %p465
        // Predicated region
        $region69: #{tpu_custom_call.1} parent=67 // pred_check
          _
        $region70: #{tpu_custom_call.1} parent=67 // pred_check_branch
          %468 = sbr.rel (%p465) target = $region72
        $region71: #{tpu_custom_call.1} parent=67 // pred_region
          %v469 = vld [vmem:[%s0] sm:$0xf]
          %v470 = vld [vmem:[%s0 + $0x4] sm:$0xf]
          %v471 = vld [vmem:[%s0 + $0x8] sm:$0xf]
          %v472 = vld [vmem:[%s0 + $0xc] sm:$0xf]
          %v473 = vld [vmem:[%s0 + $0x10] sm:$0xf]
          %v474 = vld [vmem:[%s0 + $0x14] sm:$0xf]
          %v475 = vld [vmem:[%s0 + $0x18] sm:$0xf]
          %v476 = vld [vmem:[%s0 + $0x1c] sm:$0xf]
          %v477 = vld [vmem:[%s0 + $0x20] sm:$0xf]
          %v478 = vld [vmem:[%s0 + $0x24] sm:$0xf]
          %v479 = vld [vmem:[%s0 + $0x28] sm:$0xf]
          %v480 = vld [vmem:[%s0 + $0x2c] sm:$0xf]
          %v481 = vld [vmem:[%s0 + $0x30] sm:$0xf]
          %v482 = vld [vmem:[%s0 + $0x34] sm:$0xf]
          %v483 = vld [vmem:[%s0 + $0x38] sm:$0xf]
          %v484 = vld [vmem:[%s0 + $0x3c] sm:$0xf]
          %v485 = vld [vmem:[%s4] sm:$0xf]
          %v486 = vld [vmem:[%s5] sm:$0x1]
          %v488 = vlaneseq
          %v489 = vshrl.u32 %v488, 7
          %v490 = vsub.s32 0, %v489
          %v491 = vrot.slane %v486, %v490
          %v509 = vunpack.c.l.b16 %v469
          %v510 = vunpack.c.l.b16 %v470
          %v511 = vunpack.c.l.b16 %v471
          %v512 = vunpack.c.l.b16 %v472
          %v513 = vunpack.c.l.b16 %v473
          %v514 = vunpack.c.l.b16 %v474
          %v515 = vunpack.c.l.b16 %v475
          %v516 = vunpack.c.l.b16 %v476
          %v517 = vunpack.c.l.b16 %v477
          %v518 = vunpack.c.l.b16 %v478
          %v519 = vunpack.c.l.b16 %v479
          %v520 = vunpack.c.l.b16 %v480
          %v521 = vunpack.c.l.b16 %v481
          %v522 = vunpack.c.l.b16 %v482
          %v523 = vunpack.c.l.b16 %v483
          %v524 = vunpack.c.l.b16 %v484
          %v525 = vpack.c.b16 %v510, %v509
          %v526 = vpack.c.b16 %v512, %v511
          %v527 = vpack.c.b16 %v514, %v513
          %v528 = vpack.c.b16 %v516, %v515
          %v529 = vpack.c.b16 %v518, %v517
          %v530 = vpack.c.b16 %v520, %v519
          %v531 = vpack.c.b16 %v522, %v521
          %v532 = vpack.c.b16 %v524, %v523
          %vm533 = vcmask 64512
          %v535 = vsel %vm533, %v525, 0
          %v538 = vsel %vm533, %v526, 0
          %v541 = vsel %vm533, %v527, 0
          %v544 = vsel %vm533, %v528, 0
          %v547 = vsel %vm533, %v529, 0
          %v550 = vsel %vm533, %v530, 0
          %v553 = vsel %vm533, %v531, 0
          %v556 = vsel %vm533, %v532, 0
          %vm558 = vcmask 1043456
          %v560 = vsel %vm558, %v485, 0
          %562 = vmatprep.subr.bf16.mxu0 0
          %563 = vmatpush1.bf16.msra.mxu0 %v560
          %564 = vmatprep.subr.bf16.mxu0 0
          %565 = vmatpush1.bf16.msra.mxu0 0
          %566 = vmatprep.subr.bf16.mxu0 0
          %567 = vmatpush1.bf16.msra.mxu0 0
          %568 = vmatprep.subr.bf16.mxu0 0
          %569 = vmatpush1.bf16.msra.mxu0 0
          %570 = vmatprep.subr.bf16.mxu0 0
          %571 = vmatpush1.bf16.msra.mxu0 0
          %572 = vmatprep.subr.bf16.mxu0 0
          %573 = vmatpush1.bf16.msra.mxu0 0
          %574 = vmatprep.subr.bf16.mxu0 0
          %575 = vmatpush1.bf16.msra.mxu0 0
          %576 = vmatprep.subr.bf16.mxu0 0
          %577 = vmatpush1.bf16.msra.mxu0 0
          %578 = vmatprep.subr.bf16.mxu0 0
          %579 = vmatpush1.bf16.msra.mxu0 0
          %580 = vmatprep.subr.bf16.mxu0 0
          %581 = vmatpush1.bf16.msra.mxu0 0
          %582 = vmatprep.subr.bf16.mxu0 0
          %583 = vmatpush1.bf16.msra.mxu0 0
          %584 = vmatprep.subr.bf16.mxu0 0
          %585 = vmatpush1.bf16.msra.mxu0 0
          %586 = vmatprep.subr.bf16.mxu0 0
          %587 = vmatpush1.bf16.msra.mxu0 0
          %588 = vmatprep.subr.bf16.mxu0 0
          %589 = vmatpush1.bf16.msra.mxu0 0
          %590 = vmatprep.subr.bf16.mxu0 0
          %591 = vmatpush1.bf16.msra.mxu0 0
          %592 = vmatprep.subr.bf16.mxu0 0
          %593 = vmatpush1.bf16.msra.mxu0 0
          %594 = vmatprep.mubr.bf16.mxu0 0
          %595 = vmatmul.mubr.bf16.gmra.mrb[0].mxu0 %v535
          %v596 = vpop.f32.mrb[0].mxu0
          %v597 = vadd.f32 %v491, %v596
          %v598 = vpop.f32.mrb[0].mxu0
          %v599 = vpop.f32.mrb[0].mxu0
          %v600 = vadd.f32 %v491, %v599
          %v601 = vpop.f32.mrb[0].mxu0
          %602 = vmatprep.mubr.bf16.mxu0 0
          %603 = vmatmul.mubr.bf16.gmra.mrb[0].mxu0 %v538
          %v604 = vpop.f32.mrb[0].mxu0
          %v605 = vadd.f32 %v491, %v604
          %v606 = vpop.f32.mrb[0].mxu0
          %v607 = vpop.f32.mrb[0].mxu0
          %v608 = vadd.f32 %v491, %v607
          %v609 = vpop.f32.mrb[0].mxu0
          %610 = vmatprep.mubr.bf16.mxu0 0
          %611 = vmatmul.mubr.bf16.gmra.mrb[0].mxu0 %v541
          %v612 = vpop.f32.mrb[0].mxu0
          %v613 = vadd.f32 %v491, %v612
          %v614 = vpop.f32.mrb[0].mxu0
          %v615 = vpop.f32.mrb[0].mxu0
          %v616 = vadd.f32 %v491, %v615
          %v617 = vpop.f32.mrb[0].mxu0
          %618 = vmatprep.mubr.bf16.mxu0 0
          %619 = vmatmul.mubr.bf16.gmra.mrb[0].mxu0 %v544
          %v620 = vpop.f32.mrb[0].mxu0
          %v621 = vadd.f32 %v491, %v620
          %v622 = vpop.f32.mrb[0].mxu0
          %v623 = vpop.f32.mrb[0].mxu0
          %v624 = vadd.f32 %v491, %v623
          %v625 = vpop.f32.mrb[0].mxu0
          %626 = vmatprep.mubr.bf16.mxu0 0
          %627 = vmatmul.mubr.bf16.gmra.mrb[0].mxu0 %v547
          %v628 = vpop.f32.mrb[0].mxu0
          %v629 = vadd.f32 %v491, %v628
          %v630 = vpop.f32.mrb[0].mxu0
          %v631 = vpop.f32.mrb[0].mxu0
          %v632 = vadd.f32 %v491, %v631
          %v633 = vpop.f32.mrb[0].mxu0
          %634 = vmatprep.mubr.bf16.mxu0 0
          %635 = vmatmul.mubr.bf16.gmra.mrb[0].mxu0 %v550
          %v636 = vpop.f32.mrb[0].mxu0
          %v637 = vadd.f32 %v491, %v636
          %v638 = vpop.f32.mrb[0].mxu0
          %v639 = vpop.f32.mrb[0].mxu0
          %v640 = vadd.f32 %v491, %v639
          %v641 = vpop.f32.mrb[0].mxu0
          %642 = vmatprep.mubr.bf16.mxu0 0
          %643 = vmatmul.mubr.bf16.gmra.mrb[0].mxu0 %v553
          %v644 = vpop.f32.mrb[0].mxu0
          %v645 = vadd.f32 %v491, %v644
          %v646 = vpop.f32.mrb[0].mxu0
          %v647 = vpop.f32.mrb[0].mxu0
          %v648 = vadd.f32 %v491, %v647
          %v649 = vpop.f32.mrb[0].mxu0
          %650 = vmatprep.mubr.bf16.mxu0 0
          %651 = vmatmul.mubr.bf16.gmra.mrb[0].mxu0 %v556
          %v652 = vpop.f32.mrb[0].mxu0
          %v653 = vadd.f32 %v491, %v652
          %v654 = vpop.f32.mrb[0].mxu0
          %v655 = vpop.f32.mrb[0].mxu0
          %v656 = vadd.f32 %v491, %v655
          %v657 = vpop.f32.mrb[0].mxu0
          %658 = vdwg.mxu0
          %659 = vst [vmem:[#allocation2] sm:$0xff] %v597
          %660 = vst [vmem:[#allocation2 + $0x8] sm:$0xff] %v600
          %661 = vst [vmem:[#allocation2 + $0x10] sm:$0xff] %v605
          %662 = vst [vmem:[#allocation2 + $0x18] sm:$0xff] %v608
          %663 = vst [vmem:[#allocation2 + $0x20] sm:$0xff] %v613
          %664 = vst [vmem:[#allocation2 + $0x28] sm:$0xff] %v616
          %665 = vst [vmem:[#allocation2 + $0x30] sm:$0xff] %v621
          %666 = vst [vmem:[#allocation2 + $0x38] sm:$0xff] %v624
          %667 = vst [vmem:[#allocation2 + $0x40] sm:$0xff] %v629
          %668 = vst [vmem:[#allocation2 + $0x48] sm:$0xff] %v632
          %669 = vst [vmem:[#allocation2 + $0x50] sm:$0xff] %v637
          %670 = vst [vmem:[#allocation2 + $0x58] sm:$0xff] %v640
          %671 = vst [vmem:[#allocation2 + $0x60] sm:$0xff] %v645
          %672 = vst [vmem:[#allocation2 + $0x68] sm:$0xff] %v648
          %673 = vst [vmem:[#allocation2 + $0x70] sm:$0xff] %v653
          %674 = vst [vmem:[#allocation2 + $0x78] sm:$0xff] %v656
          %v675 = vpack.c.bf16 %v600, %v597
          %v676 = vpack.c.bf16 %v608, %v605
          %v677 = vpack.c.bf16 %v616, %v613
          %v678 = vpack.c.bf16 %v624, %v621
          %v679 = vpack.c.bf16 %v632, %v629
          %v680 = vpack.c.bf16 %v640, %v637
          %v681 = vpack.c.bf16 %v648, %v645
          %v682 = vpack.c.bf16 %v656, %v653
          %683 = vst [vmem:[#allocation3] sm:$0xff] %v675
          %684 = vst [vmem:[#allocation3 + $0x8] sm:$0xff] %v676
          %685 = vst [vmem:[#allocation3 + $0x10] sm:$0xff] %v677
          %686 = vst [vmem:[#allocation3 + $0x18] sm:$0xff] %v678
          %687 = vst [vmem:[#allocation3 + $0x20] sm:$0xff] %v679
          %688 = vst [vmem:[#allocation3 + $0x28] sm:$0xff] %v680
          %689 = vst [vmem:[#allocation3 + $0x30] sm:$0xff] %v681
          %690 = vst [vmem:[#allocation3 + $0x38] sm:$0xff] %v682
        $region72: #{tpu_custom_call.1} parent=67 // pred_fallthru
          _
        // Predicated region
        $region73: #{tpu_custom_call.1} parent=67 // pred_check
          %p691 = pneg %p464
        $region74: #{tpu_custom_call.1} parent=67 // pred_check_branch
          %693 = sbr.rel (%p691) target = $region76
        $region75: #{tpu_custom_call.1} parent=67 // pred_region
          %694 = vst [vmem:[#allocation4] sm:$0xff] 0.0
          %695 = vst [vmem:[#allocation4 + $0x8] sm:$0xff] 0.0
          %696 = vst [vmem:[#allocation4 + $0x10] sm:$0xff] 0.0
          %697 = vst [vmem:[#allocation4 + $0x18] sm:$0xff] 0.0
          %698 = vst [vmem:[#allocation4 + $0x20] sm:$0xff] 0.0
          %699 = vst [vmem:[#allocation4 + $0x28] sm:$0xff] 0.0
          %700 = vst [vmem:[#allocation4 + $0x30] sm:$0xff] 0.0
          %701 = vst [vmem:[#allocation4 + $0x38] sm:$0xff] 0.0
          %702 = vst [vmem:[#allocation4 + $0x40] sm:$0xff] 0.0
          %703 = vst [vmem:[#allocation4 + $0x48] sm:$0xff] 0.0
          %704 = vst [vmem:[#allocation4 + $0x50] sm:$0xff] 0.0
          %705 = vst [vmem:[#allocation4 + $0x58] sm:$0xff] 0.0
          %706 = vst [vmem:[#allocation4 + $0x60] sm:$0xff] 0.0
          %707 = vst [vmem:[#allocation4 + $0x68] sm:$0xff] 0.0
          %708 = vst [vmem:[#allocation4 + $0x70] sm:$0xff] 0.0
          %709 = vst [vmem:[#allocation4 + $0x78] sm:$0xff] 0.0
        $region76: #{tpu_custom_call.1} parent=67 // pred_fallthru
          _
        %v710 = vld [vmem:[%s451] sm:$0xf]
        %v711 = vld [vmem:[%s451 + $0x4] sm:$0xf]
        %v712 = vld [vmem:[%s451 + $0x8] sm:$0xf]
        %v713 = vld [vmem:[%s451 + $0xc] sm:$0xf]
        %v714 = vld [vmem:[%s451 + $0x10] sm:$0xf]
        %v715 = vld [vmem:[%s451 + $0x14] sm:$0xf]
        %v716 = vld [vmem:[%s451 + $0x18] sm:$0xf]
        %v717 = vld [vmem:[%s451 + $0x1c] sm:$0xf]
        %v718 = vld [vmem:[%s451 + $0x20] sm:$0xf]
        %v719 = vld [vmem:[%s451 + $0x24] sm:$0xf]
        %v720 = vld [vmem:[%s451 + $0x28] sm:$0xf]
        %v721 = vld [vmem:[%s451 + $0x2c] sm:$0xf]
        %v722 = vld [vmem:[%s451 + $0x30] sm:$0xf]
        %v723 = vld [vmem:[%s451 + $0x34] sm:$0xf]
        %v724 = vld [vmem:[%s451 + $0x38] sm:$0xf]
        %v725 = vld [vmem:[%s451 + $0x3c] sm:$0xf]
        %v726 = vld [vmem:[%s6] sm:$0x3]
        %v727 = vld [vmem:[%s7] sm:$0x1]
        %v729 = vlaneseq
        %v730 = vshrl.u32 %v729, 7
        %v731 = vsub.s32 0, %v730
        %v732 = vrot.slane %v727, %v731
        %v750 = vunpack.c.l.b16 %v710
        %v751 = vunpack.c.l.b16 %v711
        %v752 = vunpack.c.l.b16 %v712
        %v753 = vunpack.c.l.b16 %v713
        %v754 = vunpack.c.l.b16 %v714
        %v755 = vunpack.c.l.b16 %v715
        %v756 = vunpack.c.l.b16 %v716
        %v757 = vunpack.c.l.b16 %v717
        %v758 = vunpack.c.l.b16 %v718
        %v759 = vunpack.c.l.b16 %v719
        %v760 = vunpack.c.l.b16 %v720
        %v761 = vunpack.c.l.b16 %v721
        %v762 = vunpack.c.l.b16 %v722
        %v763 = vunpack.c.l.b16 %v723
        %v764 = vunpack.c.l.b16 %v724
        %v765 = vunpack.c.l.b16 %v725
        %v766 = vpack.c.b16 %v751, %v750
        %v767 = vpack.c.b16 %v753, %v752
        %v768 = vpack.c.b16 %v755, %v754
        %v769 = vpack.c.b16 %v757, %v756
        %v770 = vpack.c.b16 %v759, %v758
        %v771 = vpack.c.b16 %v761, %v760
        %v772 = vpack.c.b16 %v763, %v762
        %v773 = vpack.c.b16 %v765, %v764
        %vm774 = vcmask 31744
        %v776 = vsel %vm774, %v766, 0
        %v779 = vsel %vm774, %v767, 0
        %v782 = vsel %vm774, %v768, 0
        %v785 = vsel %vm774, %v769, 0
        %v788 = vsel %vm774, %v770, 0
        %v791 = vsel %vm774, %v771, 0
        %v794 = vsel %vm774, %v772, 0
        %v797 = vsel %vm774, %v773, 0
        %vm799 = vcmask 1041408
        %v801 = vsel %vm799, %v726, 0
        %803 = vmatprep.subr.bf16.mxu0 0
        %804 = vmatpush1.bf16.msra.mxu0 %v801
        %805 = vmatprep.subr.bf16.mxu0 0
        %806 = vmatpush1.bf16.msra.mxu0 0
        %807 = vmatprep.subr.bf16.mxu0 0
        %808 = vmatpush1.bf16.msra.mxu0 0
        %809 = vmatprep.subr.bf16.mxu0 0
        %810 = vmatpush1.bf16.msra.mxu0 0
        %811 = vmatprep.subr.bf16.mxu0 0
        %812 = vmatpush1.bf16.msra.mxu0 0
        %813 = vmatprep.subr.bf16.mxu0 0
        %814 = vmatpush1.bf16.msra.mxu0 0
        %815 = vmatprep.subr.bf16.mxu0 0
        %816 = vmatpush1.bf16.msra.mxu0 0
        %817 = vmatprep.subr.bf16.mxu0 0
        %818 = vmatpush1.bf16.msra.mxu0 0
        %819 = vmatprep.subr.bf16.mxu0 0
        %820 = vmatpush1.bf16.msra.mxu0 0
        %821 = vmatprep.subr.bf16.mxu0 0
        %822 = vmatpush1.bf16.msra.mxu0 0
        %823 = vmatprep.subr.bf16.mxu0 0
        %824 = vmatpush1.bf16.msra.mxu0 0
        %825 = vmatprep.subr.bf16.mxu0 0
        %826 = vmatpush1.bf16.msra.mxu0 0
        %827 = vmatprep.subr.bf16.mxu0 0
        %828 = vmatpush1.bf16.msra.mxu0 0
        %829 = vmatprep.subr.bf16.mxu0 0
        %830 = vmatpush1.bf16.msra.mxu0 0
        %831 = vmatprep.subr.bf16.mxu0 0
        %832 = vmatpush1.bf16.msra.mxu0 0
        %833 = vmatprep.subr.bf16.mxu0 0
        %834 = vmatpush1.bf16.msra.mxu0 0
        %835 = vmatprep.mubr.bf16.mxu0 0
        %836 = vmatmul.mubr.bf16.gmra.mrb[0].mxu0 %v776
        %v837 = vpop.f32.mrb[0].mxu0
        %v838 = vadd.f32 %v732, %v837
        %v839 = vpop.f32.mrb[0].mxu0
        %v840 = vpop.f32.mrb[0].mxu0
        %v841 = vadd.f32 %v732, %v840
        %v842 = vpop.f32.mrb[0].mxu0
        %843 = vmatprep.mubr.bf16.mxu0 0
        %844 = vmatmul.mubr.bf16.gmra.mrb[0].mxu0 %v779
        %v845 = vpop.f32.mrb[0].mxu0
        %v846 = vadd.f32 %v732, %v845
        %v847 = vpop.f32.mrb[0].mxu0
        %v848 = vpop.f32.mrb[0].mxu0
        %v849 = vadd.f32 %v732, %v848
        %v850 = vpop.f32.mrb[0].mxu0
        %851 = vmatprep.mubr.bf16.mxu0 0
        %852 = vmatmul.mubr.bf16.gmra.mrb[0].mxu0 %v782
        %v853 = vpop.f32.mrb[0].mxu0
        %v854 = vadd.f32 %v732, %v853
        %v855 = vpop.f32.mrb[0].mxu0
        %v856 = vpop.f32.mrb[0].mxu0
        %v857 = vadd.f32 %v732, %v856
        %v858 = vpop.f32.mrb[0].mxu0
        %859 = vmatprep.mubr.bf16.mxu0 0
        %860 = vmatmul.mubr.bf16.gmra.mrb[0].mxu0 %v785
        %v861 = vpop.f32.mrb[0].mxu0
        %v862 = vadd.f32 %v732, %v861
        %v863 = vpop.f32.mrb[0].mxu0
        %v864 = vpop.f32.mrb[0].mxu0
        %v865 = vadd.f32 %v732, %v864
        %v866 = vpop.f32.mrb[0].mxu0
        %867 = vmatprep.mubr.bf16.mxu0 0
        %868 = vmatmul.mubr.bf16.gmra.mrb[0].mxu0 %v788
        %v869 = vpop.f32.mrb[0].mxu0
        %v870 = vadd.f32 %v732, %v869
        %v871 = vpop.f32.mrb[0].mxu0
        %v872 = vpop.f32.mrb[0].mxu0
        %v873 = vadd.f32 %v732, %v872
        %v874 = vpop.f32.mrb[0].mxu0
        %875 = vmatprep.mubr.bf16.mxu0 0
        %876 = vmatmul.mubr.bf16.gmra.mrb[0].mxu0 %v791
        %v877 = vpop.f32.mrb[0].mxu0
        %v878 = vadd.f32 %v732, %v877
        %v879 = vpop.f32.mrb[0].mxu0
        %v880 = vpop.f32.mrb[0].mxu0
        %v881 = vadd.f32 %v732, %v880
        %v882 = vpop.f32.mrb[0].mxu0
        %883 = vmatprep.mubr.bf16.mxu0 0
        %884 = vmatmul.mubr.bf16.gmra.mrb[0].mxu0 %v794
        %v885 = vpop.f32.mrb[0].mxu0
        %v886 = vadd.f32 %v732, %v885
        %v887 = vpop.f32.mrb[0].mxu0
        %v888 = vpop.f32.mrb[0].mxu0
        %v889 = vadd.f32 %v732, %v888
        %v890 = vpop.f32.mrb[0].mxu0
        %891 = vmatprep.mubr.bf16.mxu0 0
        %892 = vmatmul.mubr.bf16.gmra.mrb[0].mxu0 %v797
        %v893 = vpop.f32.mrb[0].mxu0
        %v894 = vadd.f32 %v732, %v893
        %v895 = vpop.f32.mrb[0].mxu0
        %v896 = vpop.f32.mrb[0].mxu0
        %v897 = vadd.f32 %v732, %v896
        %v898 = vpop.f32.mrb[0].mxu0
        %899 = vdwg.mxu0
        %v900 = vld [vmem:[%s457] sm:$0xff]
        %v901 = vld [vmem:[%s457 + $0x8] sm:$0xff]
        %v902 = vld [vmem:[%s457 + $0x10] sm:$0xff]
        %v903 = vld [vmem:[%s457 + $0x18] sm:$0xff]
        %v904 = vld [vmem:[%s457 + $0x20] sm:$0xff]
        %v905 = vld [vmem:[%s457 + $0x28] sm:$0xff]
        %v906 = vld [vmem:[%s457 + $0x30] sm:$0xff]
        %v907 = vld [vmem:[%s457 + $0x38] sm:$0xff]
        %v908 = vld [vmem:[%s457 + $0x40] sm:$0xff]
        %v909 = vld [vmem:[%s457 + $0x48] sm:$0xff]
        %v910 = vld [vmem:[%s457 + $0x50] sm:$0xff]
        %v911 = vld [vmem:[%s457 + $0x58] sm:$0xff]
        %v912 = vld [vmem:[%s457 + $0x60] sm:$0xff]
        %v913 = vld [vmem:[%s457 + $0x68] sm:$0xff]
        %v914 = vld [vmem:[%s457 + $0x70] sm:$0xff]
        %v915 = vld [vmem:[%s457 + $0x78] sm:$0xff]
        %v916 = vlaneseq
        %v917 = vand.u32 %v916, 127
        %918 = vset.pattern.permute.xlu0 0
        %919 = vperm.xlu0 %918, %v900
        %v920 = vpop.permute.xlu0 %919
        %921 = vset.pattern.permute.xlu0 0
        %922 = vperm.xlu0 %921, %v901
        %v923 = vpop.permute.xlu0 %922
        %924 = vset.pattern.permute.xlu0 0
        %925 = vperm.xlu0 %924, %v902
        %v926 = vpop.permute.xlu0 %925
        %927 = vset.pattern.permute.xlu0 0
        %928 = vperm.xlu0 %927, %v903
        %v929 = vpop.permute.xlu0 %928
        %930 = vset.pattern.permute.xlu0 0
        %931 = vperm.xlu0 %930, %v904
        %v932 = vpop.permute.xlu0 %931
        %933 = vset.pattern.permute.xlu0 0
        %934 = vperm.xlu0 %933, %v905
        %v935 = vpop.permute.xlu0 %934
        %936 = vset.pattern.permute.xlu0 0
        %937 = vperm.xlu0 %936, %v906
        %v938 = vpop.permute.xlu0 %937
        %939 = vset.pattern.permute.xlu0 0
        %940 = vperm.xlu0 %939, %v907
        %v941 = vpop.permute.xlu0 %940
        %942 = vset.pattern.permute.xlu0 0
        %943 = vperm.xlu0 %942, %v908
        %v944 = vpop.permute.xlu0 %943
        %945 = vset.pattern.permute.xlu0 0
        %946 = vperm.xlu0 %945, %v909
        %v947 = vpop.permute.xlu0 %946
        %948 = vset.pattern.permute.xlu0 0
        %949 = vperm.xlu0 %948, %v910
        %v950 = vpop.permute.xlu0 %949
        %951 = vset.pattern.permute.xlu0 0
        %952 = vperm.xlu0 %951, %v911
        %v953 = vpop.permute.xlu0 %952
        %954 = vset.pattern.permute.xlu0 0
        %955 = vperm.xlu0 %954, %v912
        %v956 = vpop.permute.xlu0 %955
        %957 = vset.pattern.permute.xlu0 0
        %958 = vperm.xlu0 %957, %v913
        %v959 = vpop.permute.xlu0 %958
        %960 = vset.pattern.permute.xlu0 0
        %961 = vperm.xlu0 %960, %v914
        %v962 = vpop.permute.xlu0 %961
        %963 = vset.pattern.permute.xlu0 0
        %964 = vperm.xlu0 %963, %v915
        %v965 = vpop.permute.xlu0 %964
        %vm966 = vcmp.eq.s32.totalorder %v920, %v917
        %vm967 = vcmp.eq.s32.totalorder %v923, %v917
        %vm968 = vcmp.eq.s32.totalorder %v926, %v917
        %vm969 = vcmp.eq.s32.totalorder %v929, %v917
        %vm970 = vcmp.eq.s32.totalorder %v932, %v917
        %vm971 = vcmp.eq.s32.totalorder %v935, %v917
        %vm972 = vcmp.eq.s32.totalorder %v938, %v917
        %vm973 = vcmp.eq.s32.totalorder %v941, %v917
        %vm974 = vcmp.eq.s32.totalorder %v944, %v917
        %vm975 = vcmp.eq.s32.totalorder %v947, %v917
        %vm976 = vcmp.eq.s32.totalorder %v950, %v917
        %vm977 = vcmp.eq.s32.totalorder %v953, %v917
        %vm978 = vcmp.eq.s32.totalorder %v956, %v917
        %vm979 = vcmp.eq.s32.totalorder %v959, %v917
        %vm980 = vcmp.eq.s32.totalorder %v962, %v917
        %vm981 = vcmp.eq.s32.totalorder %v965, %v917
        %v982 = vsel %vm966, 1, 0
        %v983 = vsel %vm967, 1, 0
        %v984 = vsel %vm968, 1, 0
        %v985 = vsel %vm969, 1, 0
        %v986 = vsel %vm970, 1, 0
        %v987 = vsel %vm971, 1, 0
        %v988 = vsel %vm972, 1, 0
        %v989 = vsel %vm973, 1, 0
        %v990 = vsel %vm974, 1, 0
        %v991 = vsel %vm975, 1, 0
        %v992 = vsel %vm976, 1, 0
        %v993 = vsel %vm977, 1, 0
        %v994 = vsel %vm978, 1, 0
        %v995 = vsel %vm979, 1, 0
        %v996 = vsel %vm980, 1, 0
        %v997 = vsel %vm981, 1, 0
        %v998 = vcvt.s32.f32 %v982
        %v999 = vcvt.s32.f32 %v983
        %v1000 = vcvt.s32.f32 %v984
        %v1001 = vcvt.s32.f32 %v985
        %v1002 = vcvt.s32.f32 %v986
        %v1003 = vcvt.s32.f32 %v987
        %v1004 = vcvt.s32.f32 %v988
        %v1005 = vcvt.s32.f32 %v989
        %v1006 = vcvt.s32.f32 %v990
        %v1007 = vcvt.s32.f32 %v991
        %v1008 = vcvt.s32.f32 %v992
        %v1009 = vcvt.s32.f32 %v993
        %v1010 = vcvt.s32.f32 %v994
        %v1011 = vcvt.s32.f32 %v995
        %v1012 = vcvt.s32.f32 %v996
        %v1013 = vcvt.s32.f32 %v997
        %v1014 = vpack.c.bf16 %v999, %v998
        %v1015 = vpack.c.bf16 %v1001, %v1000
        %v1016 = vpack.c.bf16 %v1003, %v1002
        %v1017 = vpack.c.bf16 %v1005, %v1004
        %v1018 = vpack.c.bf16 %v1007, %v1006
        %v1019 = vpack.c.bf16 %v1009, %v1008
        %v1020 = vpack.c.bf16 %v1011, %v1010
        %v1021 = vpack.c.bf16 %v1013, %v1012
        %v1022 = vld [vmem:[#allocation3] sm:$0xff]
        %v1023 = vld [vmem:[#allocation3 + $0x8] sm:$0xff]
        %v1024 = vld [vmem:[#allocation3 + $0x10] sm:$0xff]
        %v1025 = vld [vmem:[#allocation3 + $0x18] sm:$0xff]
        %v1026 = vld [vmem:[#allocation3 + $0x20] sm:$0xff]
        %v1027 = vld [vmem:[#allocation3 + $0x28] sm:$0xff]
        %v1028 = vld [vmem:[#allocation3 + $0x30] sm:$0xff]
        %v1029 = vld [vmem:[#allocation3 + $0x38] sm:$0xff]
        %1030 = vmatprep.subr.bf16.mxu0 0
        %1031 = vmatpush1.bf16.msra.mxu0 %v1022
        %1032 = vmatprep.subr.bf16.mxu0 0
        %1033 = vmatpush1.bf16.msra.mxu0 %v1023
        %1034 = vmatprep.subr.bf16.mxu0 0
        %1035 = vmatpush1.bf16.msra.mxu0 %v1024
        %1036 = vmatprep.subr.bf16.mxu0 0
        %1037 = vmatpush1.bf16.msra.mxu0 %v1025
        %1038 = vmatprep.subr.bf16.mxu0 0
        %1039 = vmatpush1.bf16.msra.mxu0 %v1026
        %1040 = vmatprep.subr.bf16.mxu0 0
        %1041 = vmatpush1.bf16.msra.mxu0 %v1027
        %1042 = vmatprep.subr.bf16.mxu0 0
        %1043 = vmatpush1.bf16.msra.mxu0 %v1028
        %1044 = vmatprep.subr.bf16.mxu0 0
        %1045 = vmatpush1.bf16.msra.mxu0 %v1029
        %1046 = vmatprep.subr.bf16.mxu0 0
        %1047 = vmatpush1.bf16.msra.mxu0 0
        %1048 = vmatprep.subr.bf16.mxu0 0
        %1049 = vmatpush1.bf16.msra.mxu0 0
        %1050 = vmatprep.subr.bf16.mxu0 0
        %1051 = vmatpush1.bf16.msra.mxu0 0
        %1052 = vmatprep.subr.bf16.mxu0 0
        %1053 = vmatpush1.bf16.msra.mxu0 0
        %1054 = vmatprep.subr.bf16.mxu0 0
        %1055 = vmatpush1.bf16.msra.mxu0 0
        %1056 = vmatprep.subr.bf16.mxu0 0
        %1057 = vmatpush1.bf16.msra.mxu0 0
        %1058 = vmatprep.subr.bf16.mxu0 0
        %1059 = vmatpush1.bf16.msra.mxu0 0
        %1060 = vmatprep.subr.bf16.mxu0 0
        %1061 = vmatpush1.bf16.msra.mxu0 0
        %1062 = vmatprep.mubr.bf16.mxu0 0
        %1063 = vmatmul.mubr.bf16.gmra.mrb[0].mxu0 %v1014
        %v1064 = vpop.f32.mrb[0].mxu0
        %v1065 = vadd.f32 %v838, %v1064
        %v1066 = vpop.f32.mrb[0].mxu0
        %v1067 = vpop.f32.mrb[0].mxu0
        %v1068 = vadd.f32 %v841, %v1067
        %v1069 = vpop.f32.mrb[0].mxu0
        %1070 = vmatprep.mubr.bf16.mxu0 0
        %1071 = vmatmul.mubr.bf16.gmra.mrb[0].mxu0 %v1015
        %v1072 = vpop.f32.mrb[0].mxu0
        %v1073 = vadd.f32 %v846, %v1072
        %v1074 = vpop.f32.mrb[0].mxu0
        %v1075 = vpop.f32.mrb[0].mxu0
        %v1076 = vadd.f32 %v849, %v1075
        %v1077 = vpop.f32.mrb[0].mxu0
        %1078 = vmatprep.mubr.bf16.mxu0 0
        %1079 = vmatmul.mubr.bf16.gmra.mrb[0].mxu0 %v1016
        %v1080 = vpop.f32.mrb[0].mxu0
        %v1081 = vadd.f32 %v854, %v1080
        %v1082 = vpop.f32.mrb[0].mxu0
        %v1083 = vpop.f32.mrb[0].mxu0
        %v1084 = vadd.f32 %v857, %v1083
        %v1085 = vpop.f32.mrb[0].mxu0
        %1086 = vmatprep.mubr.bf16.mxu0 0
        %1087 = vmatmul.mubr.bf16.gmra.mrb[0].mxu0 %v1017
        %v1088 = vpop.f32.mrb[0].mxu0
        %v1089 = vadd.f32 %v862, %v1088
        %v1090 = vpop.f32.mrb[0].mxu0
        %v1091 = vpop.f32.mrb[0].mxu0
        %v1092 = vadd.f32 %v865, %v1091
        %v1093 = vpop.f32.mrb[0].mxu0
        %1094 = vmatprep.mubr.bf16.mxu0 0
        %1095 = vmatmul.mubr.bf16.gmra.mrb[0].mxu0 %v1018
        %v1096 = vpop.f32.mrb[0].mxu0
        %v1097 = vadd.f32 %v870, %v1096
        %v1098 = vpop.f32.mrb[0].mxu0
        %v1099 = vpop.f32.mrb[0].mxu0
        %v1100 = vadd.f32 %v873, %v1099
        %v1101 = vpop.f32.mrb[0].mxu0
        %1102 = vmatprep.mubr.bf16.mxu0 0
        %1103 = vmatmul.mubr.bf16.gmra.mrb[0].mxu0 %v1019
        %v1104 = vpop.f32.mrb[0].mxu0
        %v1105 = vadd.f32 %v878, %v1104
        %v1106 = vpop.f32.mrb[0].mxu0
        %v1107 = vpop.f32.mrb[0].mxu0
        %v1108 = vadd.f32 %v881, %v1107
        %v1109 = vpop.f32.mrb[0].mxu0
        %1110 = vmatprep.mubr.bf16.mxu0 0
        %1111 = vmatmul.mubr.bf16.gmra.mrb[0].mxu0 %v1020
        %v1112 = vpop.f32.mrb[0].mxu0
        %v1113 = vadd.f32 %v886, %v1112
        %v1114 = vpop.f32.mrb[0].mxu0
        %v1115 = vpop.f32.mrb[0].mxu0
        %v1116 = vadd.f32 %v889, %v1115
        %v1117 = vpop.f32.mrb[0].mxu0
        %1118 = vmatprep.mubr.bf16.mxu0 0
        %1119 = vmatmul.mubr.bf16.gmra.mrb[0].mxu0 %v1021
        %v1120 = vpop.f32.mrb[0].mxu0
        %v1121 = vadd.f32 %v894, %v1120
        %v1122 = vpop.f32.mrb[0].mxu0
        %v1123 = vpop.f32.mrb[0].mxu0
        %v1124 = vadd.f32 %v897, %v1123
        %v1125 = vpop.f32.mrb[0].mxu0
        %1126 = vdwg.mxu0
        %v1127 = vmax.f32 %v1065, 0.0
        %v1128 = vmax.f32 %v1068, 0.0
        %v1129 = vmax.f32 %v1073, 0.0
        %v1130 = vmax.f32 %v1076, 0.0
        %v1131 = vmax.f32 %v1081, 0.0
        %v1132 = vmax.f32 %v1084, 0.0
        %v1133 = vmax.f32 %v1089, 0.0
        %v1134 = vmax.f32 %v1092, 0.0
        %v1135 = vmax.f32 %v1097, 0.0
        %v1136 = vmax.f32 %v1100, 0.0
        %v1137 = vmax.f32 %v1105, 0.0
        %v1138 = vmax.f32 %v1108, 0.0
        %v1139 = vmax.f32 %v1113, 0.0
        %v1140 = vmax.f32 %v1116, 0.0
        %v1141 = vmax.f32 %v1121, 0.0
        %v1142 = vmax.f32 %v1124, 0.0
        %v1143 = vlaneseq
        %v1144 = vshrl.u32 %v1143, 7
        %v1145 = vadd.s32 %v1144, 8
        %v1146 = vadd.s32 %v1144, 16
        %v1147 = vadd.s32 %v1144, 24
        %v1148 = vadd.s32 %v1144, 32
        %v1149 = vadd.s32 %v1144, 40
        %v1150 = vadd.s32 %v1144, 48
        %v1151 = vadd.s32 %v1144, 56
        %v1152 = vadd.s32 %v1144, 64
        %v1153 = vadd.s32 %v1144, 72
        %v1154 = vadd.s32 %v1144, 80
        %v1155 = vadd.s32 %v1144, 88
        %v1156 = vadd.s32 %v1144, 96
        %v1157 = vadd.s32 %v1144, 104
        %v1158 = vadd.s32 %v1144, 112
        %v1159 = vadd.s32 %v1144, 120
        %v1160 = vld [vmem:[%s461] sm:$0x1]
        %v1161 = vlaneseq
        %v1162 = vshrl.u32 %v1161, 7
        %v1163 = vsub.s32 0, %v1162
        %v1164 = vrot.slane %v1160, %v1163
        %vm1165 = vcmp.eq.s32.totalorder %v1144, %v1164
        %vm1166 = vcmp.eq.s32.totalorder %v1145, %v1164
        %vm1167 = vcmp.eq.s32.totalorder %v1146, %v1164
        %vm1168 = vcmp.eq.s32.totalorder %v1147, %v1164
        %vm1169 = vcmp.eq.s32.totalorder %v1148, %v1164
        %vm1170 = vcmp.eq.s32.totalorder %v1149, %v1164
        %vm1171 = vcmp.eq.s32.totalorder %v1150, %v1164
        %vm1172 = vcmp.eq.s32.totalorder %v1151, %v1164
        %vm1173 = vcmp.eq.s32.totalorder %v1152, %v1164
        %vm1174 = vcmp.eq.s32.totalorder %v1153, %v1164
        %vm1175 = vcmp.eq.s32.totalorder %v1154, %v1164
        %vm1176 = vcmp.eq.s32.totalorder %v1155, %v1164
        %vm1177 = vcmp.eq.s32.totalorder %v1156, %v1164
        %vm1178 = vcmp.eq.s32.totalorder %v1157, %v1164
        %vm1179 = vcmp.eq.s32.totalorder %v1158, %v1164
        %vm1180 = vcmp.eq.s32.totalorder %v1159, %v1164
        %v1181 = vsel %vm1165, 1, 0
        %v1182 = vsel %vm1166, 1, 0
        %v1183 = vsel %vm1167, 1, 0
        %v1184 = vsel %vm1168, 1, 0
        %v1185 = vsel %vm1169, 1, 0
        %v1186 = vsel %vm1170, 1, 0
        %v1187 = vsel %vm1171, 1, 0
        %v1188 = vsel %vm1172, 1, 0
        %v1189 = vsel %vm1173, 1, 0
        %v1190 = vsel %vm1174, 1, 0
        %v1191 = vsel %vm1175, 1, 0
        %v1192 = vsel %vm1176, 1, 0
        %v1193 = vsel %vm1177, 1, 0
        %v1194 = vsel %vm1178, 1, 0
        %v1195 = vsel %vm1179, 1, 0
        %v1196 = vsel %vm1180, 1, 0
        %v1197 = vcvt.s32.f32 %v1181
        %v1198 = vcvt.s32.f32 %v1182
        %v1199 = vcvt.s32.f32 %v1183
        %v1200 = vcvt.s32.f32 %v1184
        %v1201 = vcvt.s32.f32 %v1185
        %v1202 = vcvt.s32.f32 %v1186
        %v1203 = vcvt.s32.f32 %v1187
        %v1204 = vcvt.s32.f32 %v1188
        %v1205 = vcvt.s32.f32 %v1189
        %v1206 = vcvt.s32.f32 %v1190
        %v1207 = vcvt.s32.f32 %v1191
        %v1208 = vcvt.s32.f32 %v1192
        %v1209 = vcvt.s32.f32 %v1193
        %v1210 = vcvt.s32.f32 %v1194
        %v1211 = vcvt.s32.f32 %v1195
        %v1212 = vcvt.s32.f32 %v1196
        %v1213 = vpack.c.bf16 %v1198, %v1197
        %v1214 = vpack.c.bf16 %v1200, %v1199
        %v1215 = vpack.c.bf16 %v1202, %v1201
        %v1216 = vpack.c.bf16 %v1204, %v1203
        %v1217 = vpack.c.bf16 %v1206, %v1205
        %v1218 = vpack.c.bf16 %v1208, %v1207
        %v1219 = vpack.c.bf16 %v1210, %v1209
        %v1220 = vpack.c.bf16 %v1212, %v1211
        %v1221 = vld [vmem:[#allocation4] sm:$0xff]
        %v1222 = vld [vmem:[#allocation4 + $0x8] sm:$0xff]
        %v1223 = vld [vmem:[#allocation4 + $0x10] sm:$0xff]
        %v1224 = vld [vmem:[#allocation4 + $0x18] sm:$0xff]
        %v1225 = vld [vmem:[#allocation4 + $0x20] sm:$0xff]
        %v1226 = vld [vmem:[#allocation4 + $0x28] sm:$0xff]
        %v1227 = vld [vmem:[#allocation4 + $0x30] sm:$0xff]
        %v1228 = vld [vmem:[#allocation4 + $0x38] sm:$0xff]
        %v1229 = vld [vmem:[#allocation4 + $0x40] sm:$0xff]
        %v1230 = vld [vmem:[#allocation4 + $0x48] sm:$0xff]
        %v1231 = vld [vmem:[#allocation4 + $0x50] sm:$0xff]
        %v1232 = vld [vmem:[#allocation4 + $0x58] sm:$0xff]
        %v1233 = vld [vmem:[#allocation4 + $0x60] sm:$0xff]
        %v1234 = vld [vmem:[#allocation4 + $0x68] sm:$0xff]
        %v1235 = vld [vmem:[#allocation4 + $0x70] sm:$0xff]
        %v1236 = vld [vmem:[#allocation4 + $0x78] sm:$0xff]
        %v1237 = vpack.c.bf16 %v1128, %v1127
        %v1238 = vpack.c.bf16 %v1130, %v1129
        %v1239 = vpack.c.bf16 %v1132, %v1131
        %v1240 = vpack.c.bf16 %v1134, %v1133
        %v1241 = vpack.c.bf16 %v1136, %v1135
        %v1242 = vpack.c.bf16 %v1138, %v1137
        %v1243 = vpack.c.bf16 %v1140, %v1139
        %v1244 = vpack.c.bf16 %v1142, %v1141
        %1245 = vmatprep.subr.bf16.mxu0 0
        %1246 = vmatpush1.bf16.msra.mxu0 %v1237
        %1247 = vmatprep.subr.bf16.mxu0 0
        %1248 = vmatpush1.bf16.msra.mxu0 %v1238
        %1249 = vmatprep.subr.bf16.mxu0 0
        %1250 = vmatpush1.bf16.msra.mxu0 %v1239
        %1251 = vmatprep.subr.bf16.mxu0 0
        %1252 = vmatpush1.bf16.msra.mxu0 %v1240
        %1253 = vmatprep.subr.bf16.mxu0 0
        %1254 = vmatpush1.bf16.msra.mxu0 %v1241
        %1255 = vmatprep.subr.bf16.mxu0 0
        %1256 = vmatpush1.bf16.msra.mxu0 %v1242
        %1257 = vmatprep.subr.bf16.mxu0 0
        %1258 = vmatpush1.bf16.msra.mxu0 %v1243
        %1259 = vmatprep.subr.bf16.mxu0 0
        %1260 = vmatpush1.bf16.msra.mxu0 %v1244
        %1261 = vmatprep.subr.bf16.mxu0 0
        %1262 = vmatpush1.bf16.msra.mxu0 0
        %1263 = vmatprep.subr.bf16.mxu0 0
        %1264 = vmatpush1.bf16.msra.mxu0 0
        %1265 = vmatprep.subr.bf16.mxu0 0
        %1266 = vmatpush1.bf16.msra.mxu0 0
        %1267 = vmatprep.subr.bf16.mxu0 0
        %1268 = vmatpush1.bf16.msra.mxu0 0
        %1269 = vmatprep.subr.bf16.mxu0 0
        %1270 = vmatpush1.bf16.msra.mxu0 0
        %1271 = vmatprep.subr.bf16.mxu0 0
        %1272 = vmatpush1.bf16.msra.mxu0 0
        %1273 = vmatprep.subr.bf16.mxu0 0
        %1274 = vmatpush1.bf16.msra.mxu0 0
        %1275 = vmatprep.subr.bf16.mxu0 0
        %1276 = vmatpush1.bf16.msra.mxu0 0
        %1277 = vmatprep.mubr.bf16.mxu0 0
        %1278 = vmatmul.mubr.bf16.gmra.mrb[0].mxu0 %v1213
        %v1279 = vpop.f32.mrb[0].mxu0
        %v1280 = vadd.f32 0.0, %v1279
        %v1281 = vpop.f32.mrb[0].mxu0
        %v1282 = vpop.f32.mrb[0].mxu0
        %v1283 = vadd.f32 0.0, %v1282
        %v1284 = vpop.f32.mrb[0].mxu0
        %1285 = vmatprep.mubr.bf16.mxu0 0
        %1286 = vmatmul.mubr.bf16.gmra.mrb[0].mxu0 %v1214
        %v1287 = vpop.f32.mrb[0].mxu0
        %v1288 = vadd.f32 0.0, %v1287
        %v1289 = vpop.f32.mrb[0].mxu0
        %v1290 = vpop.f32.mrb[0].mxu0
        %v1291 = vadd.f32 0.0, %v1290
        %v1292 = vpop.f32.mrb[0].mxu0
        %1293 = vmatprep.mubr.bf16.mxu0 0
        %1294 = vmatmul.mubr.bf16.gmra.mrb[0].mxu0 %v1215
        %v1295 = vpop.f32.mrb[0].mxu0
        %v1296 = vadd.f32 0.0, %v1295
        %v1297 = vpop.f32.mrb[0].mxu0
        %v1298 = vpop.f32.mrb[0].mxu0
        %v1299 = vadd.f32 0.0, %v1298
        %v1300 = vpop.f32.mrb[0].mxu0
        %1301 = vmatprep.mubr.bf16.mxu0 0
        %1302 = vmatmul.mubr.bf16.gmra.mrb[0].mxu0 %v1216
        %v1303 = vpop.f32.mrb[0].mxu0
        %v1304 = vadd.f32 0.0, %v1303
        %v1305 = vpop.f32.mrb[0].mxu0
        %v1306 = vpop.f32.mrb[0].mxu0
        %v1307 = vadd.f32 0.0, %v1306
        %v1308 = vpop.f32.mrb[0].mxu0
        %1309 = vmatprep.mubr.bf16.mxu0 0
        %1310 = vmatmul.mubr.bf16.gmra.mrb[0].mxu0 %v1217
        %v1311 = vpop.f32.mrb[0].mxu0
        %v1312 = vadd.f32 0.0, %v1311
        %v1313 = vpop.f32.mrb[0].mxu0
        %v1314 = vpop.f32.mrb[0].mxu0
        %v1315 = vadd.f32 0.0, %v1314
        %v1316 = vpop.f32.mrb[0].mxu0
        %1317 = vmatprep.mubr.bf16.mxu0 0
        %1318 = vmatmul.mubr.bf16.gmra.mrb[0].mxu0 %v1218
        %v1319 = vpop.f32.mrb[0].mxu0
        %v1320 = vadd.f32 0.0, %v1319
        %v1321 = vpop.f32.mrb[0].mxu0
        %v1322 = vpop.f32.mrb[0].mxu0
        %v1323 = vadd.f32 0.0, %v1322
        %v1324 = vpop.f32.mrb[0].mxu0
        %1325 = vmatprep.mubr.bf16.mxu0 0
        %1326 = vmatmul.mubr.bf16.gmra.mrb[0].mxu0 %v1219
        %v1327 = vpop.f32.mrb[0].mxu0
        %v1328 = vadd.f32 0.0, %v1327
        %v1329 = vpop.f32.mrb[0].mxu0
        %v1330 = vpop.f32.mrb[0].mxu0
        %v1331 = vadd.f32 0.0, %v1330
        %v1332 = vpop.f32.mrb[0].mxu0
        %1333 = vmatprep.mubr.bf16.mxu0 0
        %1334 = vmatmul.mubr.bf16.gmra.mrb[0].mxu0 %v1220
        %v1335 = vpop.f32.mrb[0].mxu0
        %v1336 = vadd.f32 0.0, %v1335
        %v1337 = vpop.f32.mrb[0].mxu0
        %v1338 = vpop.f32.mrb[0].mxu0
        %v1339 = vadd.f32 0.0, %v1338
        %v1340 = vpop.f32.mrb[0].mxu0
        %1341 = vdwg.mxu0
        %v1342 = vadd.f32 %v1221, %v1280
        %v1343 = vadd.f32 %v1222, %v1283
        %v1344 = vadd.f32 %v1223, %v1288
        %v1345 = vadd.f32 %v1224, %v1291
        %v1346 = vadd.f32 %v1225, %v1296
        %v1347 = vadd.f32 %v1226, %v1299
        %v1348 = vadd.f32 %v1227, %v1304
        %v1349 = vadd.f32 %v1228, %v1307
        %v1350 = vadd.f32 %v1229, %v1312
        %v1351 = vadd.f32 %v1230, %v1315
        %v1352 = vadd.f32 %v1231, %v1320
        %v1353 = vadd.f32 %v1232, %v1323
        %v1354 = vadd.f32 %v1233, %v1328
        %v1355 = vadd.f32 %v1234, %v1331
        %v1356 = vadd.f32 %v1235, %v1336
        %v1357 = vadd.f32 %v1236, %v1339
        %1358 = vst [vmem:[#allocation4] sm:$0xff] %v1342
        %1359 = vst [vmem:[#allocation4 + $0x8] sm:$0xff] %v1343
        %1360 = vst [vmem:[#allocation4 + $0x10] sm:$0xff] %v1344
        %1361 = vst [vmem:[#allocation4 + $0x18] sm:$0xff] %v1345
        %1362 = vst [vmem:[#allocation4 + $0x20] sm:$0xff] %v1346
        %1363 = vst [vmem:[#allocation4 + $0x28] sm:$0xff] %v1347
        %1364 = vst [vmem:[#allocation4 + $0x30] sm:$0xff] %v1348
        %1365 = vst [vmem:[#allocation4 + $0x38] sm:$0xff] %v1349
        %1366 = vst [vmem:[#allocation4 + $0x40] sm:$0xff] %v1350
        %1367 = vst [vmem:[#allocation4 + $0x48] sm:$0xff] %v1351
        %1368 = vst [vmem:[#allocation4 + $0x50] sm:$0xff] %v1352
        %1369 = vst [vmem:[#allocation4 + $0x58] sm:$0xff] %v1353
        %1370 = vst [vmem:[#allocation4 + $0x60] sm:$0xff] %v1354
        %1371 = vst [vmem:[#allocation4 + $0x68] sm:$0xff] %v1355
        %1372 = vst [vmem:[#allocation4 + $0x70] sm:$0xff] %v1356
        %1373 = vst [vmem:[#allocation4 + $0x78] sm:$0xff] %v1357
        // Predicated region
        $region77: #{tpu_custom_call.1} parent=67 // pred_check
          %p1374 = pneg %p464
        $region78: #{tpu_custom_call.1} parent=67 // pred_check_branch
          %1376 = sbr.rel (%p1374) target = $region80
        $region79: #{tpu_custom_call.1} parent=67 // pred_region
          %v1377 = vld [vmem:[#allocation2] sm:$0xff]
          %v1378 = vld [vmem:[#allocation2 + $0x8] sm:$0xff]
          %v1379 = vld [vmem:[#allocation2 + $0x10] sm:$0xff]
          %v1380 = vld [vmem:[#allocation2 + $0x18] sm:$0xff]
          %v1381 = vld [vmem:[#allocation2 + $0x20] sm:$0xff]
          %v1382 = vld [vmem:[#allocation2 + $0x28] sm:$0xff]
          %v1383 = vld [vmem:[#allocation2 + $0x30] sm:$0xff]
          %v1384 = vld [vmem:[#allocation2 + $0x38] sm:$0xff]
          %v1385 = vld [vmem:[#allocation2 + $0x40] sm:$0xff]
          %v1386 = vld [vmem:[#allocation2 + $0x48] sm:$0xff]
          %v1387 = vld [vmem:[#allocation2 + $0x50] sm:$0xff]
          %v1388 = vld [vmem:[#allocation2 + $0x58] sm:$0xff]
          %v1389 = vld [vmem:[#allocation2 + $0x60] sm:$0xff]
          %v1390 = vld [vmem:[#allocation2 + $0x68] sm:$0xff]
          %v1391 = vld [vmem:[#allocation2 + $0x70] sm:$0xff]
          %v1392 = vld [vmem:[#allocation2 + $0x78] sm:$0xff]
          %v1393 = vld [vmem:[#allocation4] sm:$0xff]
          %v1394 = vld [vmem:[#allocation4 + $0x8] sm:$0xff]
          %v1395 = vld [vmem:[#allocation4 + $0x10] sm:$0xff]
          %v1396 = vld [vmem:[#allocation4 + $0x18] sm:$0xff]
          %v1397 = vld [vmem:[#allocation4 + $0x20] sm:$0xff]
          %v1398 = vld [vmem:[#allocation4 + $0x28] sm:$0xff]
          %v1399 = vld [vmem:[#allocation4 + $0x30] sm:$0xff]
          %v1400 = vld [vmem:[#allocation4 + $0x38] sm:$0xff]
          %v1401 = vld [vmem:[#allocation4 + $0x40] sm:$0xff]
          %v1402 = vld [vmem:[#allocation4 + $0x48] sm:$0xff]
          %v1403 = vld [vmem:[#allocation4 + $0x50] sm:$0xff]
          %v1404 = vld [vmem:[#allocation4 + $0x58] sm:$0xff]
          %v1405 = vld [vmem:[#allocation4 + $0x60] sm:$0xff]
          %v1406 = vld [vmem:[#allocation4 + $0x68] sm:$0xff]
          %v1407 = vld [vmem:[#allocation4 + $0x70] sm:$0xff]
          %v1408 = vld [vmem:[#allocation4 + $0x78] sm:$0xff]
          %v1409 = vadd.f32 %v1377, %v1393
          %v1410 = vadd.f32 %v1378, %v1394
          %v1411 = vadd.f32 %v1379, %v1395
          %v1412 = vadd.f32 %v1380, %v1396
          %v1413 = vadd.f32 %v1381, %v1397
          %v1414 = vadd.f32 %v1382, %v1398
          %v1415 = vadd.f32 %v1383, %v1399
          %v1416 = vadd.f32 %v1384, %v1400
          %v1417 = vadd.f32 %v1385, %v1401
          %v1418 = vadd.f32 %v1386, %v1402
          %v1419 = vadd.f32 %v1387, %v1403
          %v1420 = vadd.f32 %v1388, %v1404
          %v1421 = vadd.f32 %v1389, %v1405
          %v1422 = vadd.f32 %v1390, %v1406
          %v1423 = vadd.f32 %v1391, %v1407
          %v1424 = vadd.f32 %v1392, %v1408
          %v1425 = vpack.c.bf16 %v1410, %v1409
          %v1426 = vpack.c.bf16 %v1412, %v1411
          %v1427 = vpack.c.bf16 %v1414, %v1413
          %v1428 = vpack.c.bf16 %v1416, %v1415
          %v1429 = vpack.c.bf16 %v1418, %v1417
          %v1430 = vpack.c.bf16 %v1420, %v1419
          %v1431 = vpack.c.bf16 %v1422, %v1421
          %v1432 = vpack.c.bf16 %v1424, %v1423
          %v1433 = vld [vmem:[%s8] sm:$0xf]
          %v1434 = vld [vmem:[%s8 + $0x4] sm:$0xf]
          %v1435 = vld [vmem:[%s8 + $0x8] sm:$0xf]
          %v1436 = vld [vmem:[%s8 + $0xc] sm:$0xf]
          %v1437 = vld [vmem:[%s8 + $0x10] sm:$0xf]
          %v1438 = vld [vmem:[%s8 + $0x14] sm:$0xf]
          %v1439 = vld [vmem:[%s8 + $0x18] sm:$0xf]
          %v1440 = vld [vmem:[%s8 + $0x1c] sm:$0xf]
          %v1441 = vld [vmem:[%s8 + $0x20] sm:$0xf]
          %v1442 = vld [vmem:[%s8 + $0x24] sm:$0xf]
          %v1443 = vld [vmem:[%s8 + $0x28] sm:$0xf]
          %v1444 = vld [vmem:[%s8 + $0x2c] sm:$0xf]
          %v1445 = vld [vmem:[%s8 + $0x30] sm:$0xf]
          %v1446 = vld [vmem:[%s8 + $0x34] sm:$0xf]
          %v1447 = vld [vmem:[%s8 + $0x38] sm:$0xf]
          %v1448 = vld [vmem:[%s8 + $0x3c] sm:$0xf]
          %v1449 = vld [vmem:[%s9] sm:$0x1]
          %v1451 = vlaneseq
          %v1452 = vshrl.u32 %v1451, 7
          %v1453 = vsub.s32 0, %v1452
          %v1454 = vrot.slane %v1449, %v1453
          %v1472 = vunpack.c.l.b16 %v1433
          %v1473 = vunpack.c.l.b16 %v1434
          %v1474 = vunpack.c.l.b16 %v1435
          %v1475 = vunpack.c.l.b16 %v1436
          %v1476 = vunpack.c.l.b16 %v1437
          %v1477 = vunpack.c.l.b16 %v1438
          %v1478 = vunpack.c.l.b16 %v1439
          %v1479 = vunpack.c.l.b16 %v1440
          %v1480 = vunpack.c.l.b16 %v1441
          %v1481 = vunpack.c.l.b16 %v1442
          %v1482 = vunpack.c.l.b16 %v1443
          %v1483 = vunpack.c.l.b16 %v1444
          %v1484 = vunpack.c.l.b16 %v1445
          %v1485 = vunpack.c.l.b16 %v1446
          %v1486 = vunpack.c.l.b16 %v1447
          %v1487 = vunpack.c.l.b16 %v1448
          %v1488 = vpack.c.b16 %v1473, %v1472
          %v1489 = vpack.c.b16 %v1475, %v1474
          %v1490 = vpack.c.b16 %v1477, %v1476
          %v1491 = vpack.c.b16 %v1479, %v1478
          %v1492 = vpack.c.b16 %v1481, %v1480
          %v1493 = vpack.c.b16 %v1483, %v1482
          %v1494 = vpack.c.b16 %v1485, %v1484
          %v1495 = vpack.c.b16 %v1487, %v1486
          %1504 = vmatprep.subr.bf16.mxu0 0
          %1505 = vmatpush1.bf16.msra.mxu0 %v1488
          %1506 = vmatprep.subr.bf16.mxu0 0
          %1507 = vmatpush1.bf16.msra.mxu0 %v1489
          %1508 = vmatprep.subr.bf16.mxu0 0
          %1509 = vmatpush1.bf16.msra.mxu0 %v1490
          %1510 = vmatprep.subr.bf16.mxu0 0
          %1511 = vmatpush1.bf16.msra.mxu0 %v1491
          %1512 = vmatprep.subr.bf16.mxu0 0
          %1513 = vmatpush1.bf16.msra.mxu0 %v1492
          %1514 = vmatprep.subr.bf16.mxu0 0
          %1515 = vmatpush1.bf16.msra.mxu0 %v1493
          %1516 = vmatprep.subr.bf16.mxu0 0
          %1517 = vmatpush1.bf16.msra.mxu0 %v1494
          %1518 = vmatprep.subr.bf16.mxu0 0
          %1519 = vmatpush1.bf16.msra.mxu0 %v1495
          %1520 = vmatprep.subr.bf16.mxu0 0
          %1521 = vmatpush1.bf16.msra.mxu0 0
          %1522 = vmatprep.subr.bf16.mxu0 0
          %1523 = vmatpush1.bf16.msra.mxu0 0
          %1524 = vmatprep.subr.bf16.mxu0 0
          %1525 = vmatpush1.bf16.msra.mxu0 0
          %1526 = vmatprep.subr.bf16.mxu0 0
          %1527 = vmatpush1.bf16.msra.mxu0 0
          %1528 = vmatprep.subr.bf16.mxu0 0
          %1529 = vmatpush1.bf16.msra.mxu0 0
          %1530 = vmatprep.subr.bf16.mxu0 0
          %1531 = vmatpush1.bf16.msra.mxu0 0
          %1532 = vmatprep.subr.bf16.mxu0 0
          %1533 = vmatpush1.bf16.msra.mxu0 0
          %1534 = vmatprep.subr.bf16.mxu0 0
          %1535 = vmatpush1.bf16.msra.mxu0 0
          %1536 = vmatprep.mubr.bf16.mxu0 0
          %1537 = vmatmul.mubr.bf16.gmra.mrb[0].mxu0 %v1425
          %v1538 = vpop.f32.mrb[0].mxu0
          %v1539 = vadd.f32 %v1454, %v1538
          %v1540 = vpop.f32.mrb[0].mxu0
          %v1541 = vpop.f32.mrb[0].mxu0
          %v1542 = vadd.f32 %v1454, %v1541
          %v1543 = vpop.f32.mrb[0].mxu0
          %1544 = vmatprep.mubr.bf16.mxu0 0
          %1545 = vmatmul.mubr.bf16.gmra.mrb[0].mxu0 %v1426
          %v1546 = vpop.f32.mrb[0].mxu0
          %v1547 = vadd.f32 %v1454, %v1546
          %v1548 = vpop.f32.mrb[0].mxu0
          %v1549 = vpop.f32.mrb[0].mxu0
          %v1550 = vadd.f32 %v1454, %v1549
          %v1551 = vpop.f32.mrb[0].mxu0
          %1552 = vmatprep.mubr.bf16.mxu0 0
          %1553 = vmatmul.mubr.bf16.gmra.mrb[0].mxu0 %v1427
          %v1554 = vpop.f32.mrb[0].mxu0
          %v1555 = vadd.f32 %v1454, %v1554
          %v1556 = vpop.f32.mrb[0].mxu0
          %v1557 = vpop.f32.mrb[0].mxu0
          %v1558 = vadd.f32 %v1454, %v1557
          %v1559 = vpop.f32.mrb[0].mxu0
          %1560 = vmatprep.mubr.bf16.mxu0 0
          %1561 = vmatmul.mubr.bf16.gmra.mrb[0].mxu0 %v1428
          %v1562 = vpop.f32.mrb[0].mxu0
          %v1563 = vadd.f32 %v1454, %v1562
          %v1564 = vpop.f32.mrb[0].mxu0
          %v1565 = vpop.f32.mrb[0].mxu0
          %v1566 = vadd.f32 %v1454, %v1565
          %v1567 = vpop.f32.mrb[0].mxu0
          %1568 = vmatprep.mubr.bf16.mxu0 0
          %1569 = vmatmul.mubr.bf16.gmra.mrb[0].mxu0 %v1429
          %v1570 = vpop.f32.mrb[0].mxu0
          %v1571 = vadd.f32 %v1454, %v1570
          %v1572 = vpop.f32.mrb[0].mxu0
          %v1573 = vpop.f32.mrb[0].mxu0
          %v1574 = vadd.f32 %v1454, %v1573
          %v1575 = vpop.f32.mrb[0].mxu0
          %1576 = vmatprep.mubr.bf16.mxu0 0
          %1577 = vmatmul.mubr.bf16.gmra.mrb[0].mxu0 %v1430
          %v1578 = vpop.f32.mrb[0].mxu0
          %v1579 = vadd.f32 %v1454, %v1578
          %v1580 = vpop.f32.mrb[0].mxu0
          %v1581 = vpop.f32.mrb[0].mxu0
          %v1582 = vadd.f32 %v1454, %v1581
          %v1583 = vpop.f32.mrb[0].mxu0
          %1584 = vmatprep.mubr.bf16.mxu0 0
          %1585 = vmatmul.mubr.bf16.gmra.mrb[0].mxu0 %v1431
          %v1586 = vpop.f32.mrb[0].mxu0
          %v1587 = vadd.f32 %v1454, %v1586
          %v1588 = vpop.f32.mrb[0].mxu0
          %v1589 = vpop.f32.mrb[0].mxu0
          %v1590 = vadd.f32 %v1454, %v1589
          %v1591 = vpop.f32.mrb[0].mxu0
          %1592 = vmatprep.mubr.bf16.mxu0 0
          %1593 = vmatmul.mubr.bf16.gmra.mrb[0].mxu0 %v1432
          %v1594 = vpop.f32.mrb[0].mxu0
          %v1595 = vadd.f32 %v1454, %v1594
          %v1596 = vpop.f32.mrb[0].mxu0
          %v1597 = vpop.f32.mrb[0].mxu0
          %v1598 = vadd.f32 %v1454, %v1597
          %v1599 = vpop.f32.mrb[0].mxu0
          %1600 = vdwg.mxu0
          %v1601 = vmax.f32 %v1539, 0.0
          %v1602 = vmax.f32 %v1542, 0.0
          %v1603 = vmax.f32 %v1547, 0.0
          %v1604 = vmax.f32 %v1550, 0.0
          %v1605 = vmax.f32 %v1555, 0.0
          %v1606 = vmax.f32 %v1558, 0.0
          %v1607 = vmax.f32 %v1563, 0.0
          %v1608 = vmax.f32 %v1566, 0.0
          %v1609 = vmax.f32 %v1571, 0.0
          %v1610 = vmax.f32 %v1574, 0.0
          %v1611 = vmax.f32 %v1579, 0.0
          %v1612 = vmax.f32 %v1582, 0.0
          %v1613 = vmax.f32 %v1587, 0.0
          %v1614 = vmax.f32 %v1590, 0.0
          %v1615 = vmax.f32 %v1595, 0.0
          %v1616 = vmax.f32 %v1598, 0.0
          %v1617 = vpack.c.bf16 %v1602, %v1601
          %v1618 = vpack.c.bf16 %v1604, %v1603
          %v1619 = vpack.c.bf16 %v1606, %v1605
          %v1620 = vpack.c.bf16 %v1608, %v1607
          %v1621 = vpack.c.bf16 %v1610, %v1609
          %v1622 = vpack.c.bf16 %v1612, %v1611
          %v1623 = vpack.c.bf16 %v1614, %v1613
          %v1624 = vpack.c.bf16 %v1616, %v1615
          %v1625 = vld [vmem:[%s10] sm:$0xf]
          %v1626 = vld [vmem:[%s10 + $0x4] sm:$0xf]
          %v1627 = vld [vmem:[%s10 + $0x8] sm:$0xf]
          %v1628 = vld [vmem:[%s10 + $0xc] sm:$0xf]
          %v1629 = vld [vmem:[%s10 + $0x10] sm:$0xf]
          %v1630 = vld [vmem:[%s10 + $0x14] sm:$0xf]
          %v1631 = vld [vmem:[%s10 + $0x18] sm:$0xf]
          %v1632 = vld [vmem:[%s10 + $0x1c] sm:$0xf]
          %v1633 = vld [vmem:[%s10 + $0x20] sm:$0xf]
          %v1634 = vld [vmem:[%s10 + $0x24] sm:$0xf]
          %v1635 = vld [vmem:[%s10 + $0x28] sm:$0xf]
          %v1636 = vld [vmem:[%s10 + $0x2c] sm:$0xf]
          %v1637 = vld [vmem:[%s10 + $0x30] sm:$0xf]
          %v1638 = vld [vmem:[%s10 + $0x34] sm:$0xf]
          %v1639 = vld [vmem:[%s10 + $0x38] sm:$0xf]
          %v1640 = vld [vmem:[%s10 + $0x3c] sm:$0xf]
          %v1641 = vld [vmem:[%s11] sm:$0x1]
          %v1643 = vlaneseq
          %v1644 = vshrl.u32 %v1643, 7
          %v1645 = vsub.s32 0, %v1644
          %v1646 = vrot.slane %v1641, %v1645
          %v1664 = vunpack.c.l.b16 %v1625
          %v1665 = vunpack.c.l.b16 %v1626
          %v1666 = vunpack.c.l.b16 %v1627
          %v1667 = vunpack.c.l.b16 %v1628
          %v1668 = vunpack.c.l.b16 %v1629
          %v1669 = vunpack.c.l.b16 %v1630
          %v1670 = vunpack.c.l.b16 %v1631
          %v1671 = vunpack.c.l.b16 %v1632
          %v1672 = vunpack.c.l.b16 %v1633
          %v1673 = vunpack.c.l.b16 %v1634
          %v1674 = vunpack.c.l.b16 %v1635
          %v1675 = vunpack.c.l.b16 %v1636
          %v1676 = vunpack.c.l.b16 %v1637
          %v1677 = vunpack.c.l.b16 %v1638
          %v1678 = vunpack.c.l.b16 %v1639
          %v1679 = vunpack.c.l.b16 %v1640
          %v1680 = vpack.c.b16 %v1665, %v1664
          %v1681 = vpack.c.b16 %v1667, %v1666
          %v1682 = vpack.c.b16 %v1669, %v1668
          %v1683 = vpack.c.b16 %v1671, %v1670
          %v1684 = vpack.c.b16 %v1673, %v1672
          %v1685 = vpack.c.b16 %v1675, %v1674
          %v1686 = vpack.c.b16 %v1677, %v1676
          %v1687 = vpack.c.b16 %v1679, %v1678
          %1696 = vmatprep.subr.bf16.mxu0 0
          %1697 = vmatpush1.bf16.msra.mxu0 %v1680
          %1698 = vmatprep.subr.bf16.mxu0 0
          %1699 = vmatpush1.bf16.msra.mxu0 %v1681
          %1700 = vmatprep.subr.bf16.mxu0 0
          %1701 = vmatpush1.bf16.msra.mxu0 %v1682
          %1702 = vmatprep.subr.bf16.mxu0 0
          %1703 = vmatpush1.bf16.msra.mxu0 %v1683
          %1704 = vmatprep.subr.bf16.mxu0 0
          %1705 = vmatpush1.bf16.msra.mxu0 %v1684
          %1706 = vmatprep.subr.bf16.mxu0 0
          %1707 = vmatpush1.bf16.msra.mxu0 %v1685
          %1708 = vmatprep.subr.bf16.mxu0 0
          %1709 = vmatpush1.bf16.msra.mxu0 %v1686
          %1710 = vmatprep.subr.bf16.mxu0 0
          %1711 = vmatpush1.bf16.msra.mxu0 %v1687
          %1712 = vmatprep.subr.bf16.mxu0 0
          %1713 = vmatpush1.bf16.msra.mxu0 0
          %1714 = vmatprep.subr.bf16.mxu0 0
          %1715 = vmatpush1.bf16.msra.mxu0 0
          %1716 = vmatprep.subr.bf16.mxu0 0
          %1717 = vmatpush1.bf16.msra.mxu0 0
          %1718 = vmatprep.subr.bf16.mxu0 0
          %1719 = vmatpush1.bf16.msra.mxu0 0
          %1720 = vmatprep.subr.bf16.mxu0 0
          %1721 = vmatpush1.bf16.msra.mxu0 0
          %1722 = vmatprep.subr.bf16.mxu0 0
          %1723 = vmatpush1.bf16.msra.mxu0 0
          %1724 = vmatprep.subr.bf16.mxu0 0
          %1725 = vmatpush1.bf16.msra.mxu0 0
          %1726 = vmatprep.subr.bf16.mxu0 0
          %1727 = vmatpush1.bf16.msra.mxu0 0
          %1728 = vmatprep.mubr.bf16.mxu0 0
          %1729 = vmatmul.mubr.bf16.gmra.mrb[0].mxu0 %v1617
          %v1730 = vpop.f32.mrb[0].mxu0
          %v1731 = vadd.f32 %v1646, %v1730
          %v1732 = vpop.f32.mrb[0].mxu0
          %v1733 = vpop.f32.mrb[0].mxu0
          %v1734 = vadd.f32 %v1646, %v1733
          %v1735 = vpop.f32.mrb[0].mxu0
          %1736 = vmatprep.mubr.bf16.mxu0 0
          %1737 = vmatmul.mubr.bf16.gmra.mrb[0].mxu0 %v1618
          %v1738 = vpop.f32.mrb[0].mxu0
          %v1739 = vadd.f32 %v1646, %v1738
          %v1740 = vpop.f32.mrb[0].mxu0
          %v1741 = vpop.f32.mrb[0].mxu0
          %v1742 = vadd.f32 %v1646, %v1741
          %v1743 = vpop.f32.mrb[0].mxu0
          %1744 = vmatprep.mubr.bf16.mxu0 0
          %1745 = vmatmul.mubr.bf16.gmra.mrb[0].mxu0 %v1619
          %v1746 = vpop.f32.mrb[0].mxu0
          %v1747 = vadd.f32 %v1646, %v1746
          %v1748 = vpop.f32.mrb[0].mxu0
          %v1749 = vpop.f32.mrb[0].mxu0
          %v1750 = vadd.f32 %v1646, %v1749
          %v1751 = vpop.f32.mrb[0].mxu0
          %1752 = vmatprep.mubr.bf16.mxu0 0
          %1753 = vmatmul.mubr.bf16.gmra.mrb[0].mxu0 %v1620
          %v1754 = vpop.f32.mrb[0].mxu0
          %v1755 = vadd.f32 %v1646, %v1754
          %v1756 = vpop.f32.mrb[0].mxu0
          %v1757 = vpop.f32.mrb[0].mxu0
          %v1758 = vadd.f32 %v1646, %v1757
          %v1759 = vpop.f32.mrb[0].mxu0
          %1760 = vmatprep.mubr.bf16.mxu0 0
          %1761 = vmatmul.mubr.bf16.gmra.mrb[0].mxu0 %v1621
          %v1762 = vpop.f32.mrb[0].mxu0
          %v1763 = vadd.f32 %v1646, %v1762
          %v1764 = vpop.f32.mrb[0].mxu0
          %v1765 = vpop.f32.mrb[0].mxu0
          %v1766 = vadd.f32 %v1646, %v1765
          %v1767 = vpop.f32.mrb[0].mxu0
          %1768 = vmatprep.mubr.bf16.mxu0 0
          %1769 = vmatmul.mubr.bf16.gmra.mrb[0].mxu0 %v1622
          %v1770 = vpop.f32.mrb[0].mxu0
          %v1771 = vadd.f32 %v1646, %v1770
          %v1772 = vpop.f32.mrb[0].mxu0
          %v1773 = vpop.f32.mrb[0].mxu0
          %v1774 = vadd.f32 %v1646, %v1773
          %v1775 = vpop.f32.mrb[0].mxu0
          %1776 = vmatprep.mubr.bf16.mxu0 0
          %1777 = vmatmul.mubr.bf16.gmra.mrb[0].mxu0 %v1623
          %v1778 = vpop.f32.mrb[0].mxu0
          %v1779 = vadd.f32 %v1646, %v1778
          %v1780 = vpop.f32.mrb[0].mxu0
          %v1781 = vpop.f32.mrb[0].mxu0
          %v1782 = vadd.f32 %v1646, %v1781
          %v1783 = vpop.f32.mrb[0].mxu0
          %1784 = vmatprep.mubr.bf16.mxu0 0
          %1785 = vmatmul.mubr.bf16.gmra.mrb[0].mxu0 %v1624
          %v1786 = vpop.f32.mrb[0].mxu0
          %v1787 = vadd.f32 %v1646, %v1786
          %v1788 = vpop.f32.mrb[0].mxu0
          %v1789 = vpop.f32.mrb[0].mxu0
          %v1790 = vadd.f32 %v1646, %v1789
          %v1791 = vpop.f32.mrb[0].mxu0
          %1792 = vdwg.mxu0
          %1793 = vst [vmem:[#allocation2] sm:$0xff] %v1731
          %1794 = vst [vmem:[#allocation2 + $0x8] sm:$0xff] %v1734
          %1795 = vst [vmem:[#allocation2 + $0x10] sm:$0xff] %v1739
          %1796 = vst [vmem:[#allocation2 + $0x18] sm:$0xff] %v1742
          %1797 = vst [vmem:[#allocation2 + $0x20] sm:$0xff] %v1747
          %1798 = vst [vmem:[#allocation2 + $0x28] sm:$0xff] %v1750
          %1799 = vst [vmem:[#allocation2 + $0x30] sm:$0xff] %v1755
          %1800 = vst [vmem:[#allocation2 + $0x38] sm:$0xff] %v1758
          %1801 = vst [vmem:[#allocation2 + $0x40] sm:$0xff] %v1763
          %1802 = vst [vmem:[#allocation2 + $0x48] sm:$0xff] %v1766
          %1803 = vst [vmem:[#allocation2 + $0x50] sm:$0xff] %v1771
          %1804 = vst [vmem:[#allocation2 + $0x58] sm:$0xff] %v1774
          %1805 = vst [vmem:[#allocation2 + $0x60] sm:$0xff] %v1779
          %1806 = vst [vmem:[#allocation2 + $0x68] sm:$0xff] %v1782
          %1807 = vst [vmem:[#allocation2 + $0x70] sm:$0xff] %v1787
          %1808 = vst [vmem:[#allocation2 + $0x78] sm:$0xff] %v1790
          %v1809 = vpack.c.bf16 %v1734, %v1731
          %v1810 = vpack.c.bf16 %v1742, %v1739
          %v1811 = vpack.c.bf16 %v1750, %v1747
          %v1812 = vpack.c.bf16 %v1758, %v1755
          %v1813 = vpack.c.bf16 %v1766, %v1763
          %v1814 = vpack.c.bf16 %v1774, %v1771
          %v1815 = vpack.c.bf16 %v1782, %v1779
          %v1816 = vpack.c.bf16 %v1790, %v1787
          %1817 = vst [vmem:[#allocation3] sm:$0xff] %v1809
          %1818 = vst [vmem:[#allocation3 + $0x8] sm:$0xff] %v1810
          %1819 = vst [vmem:[#allocation3 + $0x10] sm:$0xff] %v1811
          %1820 = vst [vmem:[#allocation3 + $0x18] sm:$0xff] %v1812
          %1821 = vst [vmem:[#allocation3 + $0x20] sm:$0xff] %v1813
          %1822 = vst [vmem:[#allocation3 + $0x28] sm:$0xff] %v1814
          %1823 = vst [vmem:[#allocation3 + $0x30] sm:$0xff] %v1815
          %1824 = vst [vmem:[#allocation3 + $0x38] sm:$0xff] %v1816
          %v1833 = vunpack.c.l.b16 %v1809
          %v1834 = vunpack.c.h.b16 %v1809
          %v1835 = vunpack.c.l.b16 %v1810
          %v1836 = vunpack.c.h.b16 %v1810
          %v1837 = vunpack.c.l.b16 %v1811
          %v1838 = vunpack.c.h.b16 %v1811
          %v1839 = vunpack.c.l.b16 %v1812
          %v1840 = vunpack.c.h.b16 %v1812
          %v1841 = vunpack.c.l.b16 %v1813
          %v1842 = vunpack.c.h.b16 %v1813
          %v1843 = vunpack.c.l.b16 %v1814
          %v1844 = vunpack.c.h.b16 %v1814
          %v1845 = vunpack.c.l.b16 %v1815
          %v1846 = vunpack.c.h.b16 %v1815
          %v1847 = vunpack.c.l.b16 %v1816
          %v1848 = vunpack.c.h.b16 %v1816
          %v1849 = vpack.c.b16 %v1833, %v1833
          %v1850 = vpack.c.b16 %v1834, %v1834
          %v1851 = vpack.c.b16 %v1835, %v1835
          %v1852 = vpack.c.b16 %v1836, %v1836
          %v1853 = vpack.c.b16 %v1837, %v1837
          %v1854 = vpack.c.b16 %v1838, %v1838
          %v1855 = vpack.c.b16 %v1839, %v1839
          %v1856 = vpack.c.b16 %v1840, %v1840
          %v1857 = vpack.c.b16 %v1841, %v1841
          %v1858 = vpack.c.b16 %v1842, %v1842
          %v1859 = vpack.c.b16 %v1843, %v1843
          %v1860 = vpack.c.b16 %v1844, %v1844
          %v1861 = vpack.c.b16 %v1845, %v1845
          %v1862 = vpack.c.b16 %v1846, %v1846
          %v1863 = vpack.c.b16 %v1847, %v1847
          %v1864 = vpack.c.b16 %v1848, %v1848
          %1881 = vst [vmem:[%s446] sm:$0xf] %v1849
          %1882 = vst [vmem:[%s446 + $0x4] sm:$0xf] %v1850
          %1883 = vst [vmem:[%s446 + $0x8] sm:$0xf] %v1851
          %1884 = vst [vmem:[%s446 + $0xc] sm:$0xf] %v1852
          %1885 = vst [vmem:[%s446 + $0x10] sm:$0xf] %v1853
          %1886 = vst [vmem:[%s446 + $0x14] sm:$0xf] %v1854
          %1887 = vst [vmem:[%s446 + $0x18] sm:$0xf] %v1855
          %1888 = vst [vmem:[%s446 + $0x1c] sm:$0xf] %v1856
          %1889 = vst [vmem:[%s446 + $0x20] sm:$0xf] %v1857
          %1890 = vst [vmem:[%s446 + $0x24] sm:$0xf] %v1858
          %1891 = vst [vmem:[%s446 + $0x28] sm:$0xf] %v1859
          %1892 = vst [vmem:[%s446 + $0x2c] sm:$0xf] %v1860
          %1893 = vst [vmem:[%s446 + $0x30] sm:$0xf] %v1861
          %1894 = vst [vmem:[%s446 + $0x34] sm:$0xf] %v1862
          %1895 = vst [vmem:[%s446 + $0x38] sm:$0xf] %v1863
          %1896 = vst [vmem:[%s446 + $0x3c] sm:$0xf] %v1864
        $region80: #{tpu_custom_call.1} parent=67 // pred_fallthru
          _
        %s1897 = sand.u32 %s313, 1
        %s1898 = scalar_lea.sflag [#allocation6], %s1897
        %s1899 = sand.u32 %s313, 1
        %s1900 = smul.addr %s1899, 64
        %s1901 = scalar_lea.vmem [#allocation5], %s1900
        // Predicated region
        $region81: #{tpu_custom_call.1} parent=67 // pred_check
          %p1902 = pneg %p323
        $region82: #{tpu_custom_call.1} parent=67 // pred_check_branch
          %1904 = sbr.rel (%p1902) target = $region84
        $region83: #{tpu_custom_call.1} parent=67 // pred_region
          %s1906 = ssub.s32 1024, 1024
          %1907 = vsyncadd %s1898, %s1906
          %s1908 = smul.addr %s30, 16
          %s1909 = smul.addr %s1908, 64
          %s1910 = scalar_lea.hbm %s12, %s1909
          %s1911 = sshll.u32 %s1901, 4
          %s1912 = int_to_ptr.vmem [resolvable:$true] %s1911
          %1917 = dma.vmem_to_hbm [thread:$0]  %s1912, 1024, %s1910, %s1898, 64, 64, 4
        $region84: #{tpu_custom_call.1} parent=67 // pred_fallthru
          _
      $region68: #{tpu_custom_call.1} parent=5 // pred_fallthru
        _
      %p1918 = scmp.le.s32.totalorder 2, %s21
      // Predicated region
      $region85: #{tpu_custom_call.1} parent=5 // pred_check
        %p1919 = pneg %p1918
      $region86: #{tpu_custom_call.1} parent=5 // pred_check_branch
        %1921 = sbr.rel (%p1919) target = $region88
      $region87: #{tpu_custom_call.1} parent=5 // pred_region
        %s1922 = ssub.s32 %s21, 2
        // Predicated region
        $region89: #{tpu_custom_call.1} parent=87 // pred_check
          %p1923 = pneg %p329
        $region90: #{tpu_custom_call.1} parent=87 // pred_check_branch
          %1925 = sbr.rel (%p1923) target = $region92
        $region91: #{tpu_custom_call.1} parent=87 // pred_region
          %s1926 = sand.u32 %s314, 1
          %s1927 = scalar_lea.sflag [#allocation6], %s1926
          %s1928 = sand.u32 %s314, 1
          %s1929 = smul.addr %s1928, 64
          %s1930 = scalar_lea.vmem [#allocation5], %s1929
          %1931 = dma.done %s1927, 1024
        $region92: #{tpu_custom_call.1} parent=87 // pred_fallthru
          _
      $region88: #{tpu_custom_call.1} parent=5 // pred_fallthru
        _
    $region6: #{tpu_custom_call.1} parent=1 // loop_footer
      %s25 = sadd.s32 1, %s21
    $region7: #{tpu_custom_call.1} parent=1 // loop_footer_branch
      %20 = sbr.rel target = $region3
    $region8: #{tpu_custom_call.1} parent=1 // loop_exit
      _
    %1932 = vsyncpa [#allocation6], 1
    %s1933 = scalar_lea.sflag [#allocation6], 1
    %1934 = vsyncpa %s1933, 1

</llo_original>
